<compile_context>
chip_gen: v7x
topology: tpu7x:2x2x1
jax: 0.10.0
libtpu: 0.0.40
codegen_flags: <defaults>
</compile_context>

<pallas_src>
import jax
import jax.numpy as jnp
from jax.experimental import pallas as pl
from jax.experimental.pallas import tpu as pltpu


def _round_up(n, m):
    return ((n + m - 1) // m) * m


def vae_kernel(x_ref, eps_ref, drop_ref,
               w1_ref, b1_ref, w23_ref, b23_ref,
               wz_ref, bz_ref, wd2_ref, bd2_ref, wc2_ref, bc2_ref,
               z_ref, recon_ref, probs_ref):
    f32 = jnp.float32
    bf16 = jnp.bfloat16
    LZ = eps_ref.shape[-1]            # lane-padded latent width (multiple of 128)
    DEC_H = wd2_ref.shape[0]          # decoder hidden width (512)

    # ---------------- encoder ----------------
    x = x_ref[...].astype(bf16)       # bf16 matmul operands, f32 accumulate
    h = jnp.maximum(
        jnp.dot(x, w1_ref[...], preferred_element_type=f32) + b1_ref[...],
        0.0).astype(bf16)             # fold bf16 cast into ReLU (only bf16 temp stays live)
    # fused, lane-padded mu || log-sigma projection: one (512, 2*LZ) matmul
    y = jnp.dot(h, w23_ref[...], preferred_element_type=f32) + b23_ref[...]
    mu = y[:, :LZ]                    # pad lanes: mu = 0
    sigma = jnp.exp(y[:, LZ:])        # pad lanes: exp(0) = 1
    z = mu + sigma * eps_ref[...]     # eps pad lanes are 0 => z pad lanes are exactly 0
    z_ref[...] = z                    # lane-dense (TB, LZ) store, no masked vst

    # ---- fused decoder-hidden || classifier-hidden matmul: (TB,LZ) @ (LZ, 512+128) ----
    zb = z.astype(bf16)
    dc = jnp.maximum(
        jnp.dot(zb, wz_ref[...], preferred_element_type=f32) + bz_ref[...], 0.0)
    d = dc[:, :DEC_H].astype(bf16)                      # decoder hidden (ReLU'd)
    c = (dc[:, DEC_H:] * drop_ref[...]).astype(bf16)    # classifier hidden * dropout mask

    # ---------------- decoder output ----------------
    rec_logits = jnp.dot(d, wd2_ref[...], preferred_element_type=f32) + bd2_ref[...]
    # sigmoid: exp + approx reciprocal both run on the (otherwise idle) EUP slot
    recon_ref[...] = pl.reciprocal(1.0 + jnp.exp(-rec_logits),
                                   approx=True).astype(recon_ref.dtype)

    # ---------------- classifier output ----------------
    logits = jnp.dot(c, wc2_ref[...], preferred_element_type=f32) + bc2_ref[...]
    m = jnp.max(logits, axis=1, keepdims=True)
    e = jnp.exp(logits - m)           # pad lanes carry bias -1e30 -> exp == 0
    probs_ref[...] = (e * pl.reciprocal(jnp.sum(e, axis=1, keepdims=True),
                                        approx=True)).astype(probs_ref.dtype)


def vae_forward(x, eps, drop_mask, params, *, n_class, batch_tile=256,
                act_out_dtype=jnp.bfloat16):
    """x: (B, input_dim) f32, eps: (B, latent_dim) f32, drop_mask: (B, latent_dim//2) f32.

    Returns (z f32 (B, latent), recon act_out_dtype (B, 1, input_dim),
             probs act_out_dtype (B, n_class)).
    """
    B, input_dim = x.shape
    latent_dim = eps.shape[1]
    hid = drop_mask.shape[1]

    # Padded widths are baked into the packed parameters.
    LZ = params["wz"].shape[0]           # lane-padded latent
    HID_PAD = params["wc2"].shape[0]     # lane-padded classifier hidden
    CLS_PAD = params["wc2"].shape[1]     # lane-padded classifier output
    ENC_H = params["w1"].shape[1]        # 512
    DEC_H = params["wd2"].shape[0]       # 512

    # --- batch tiling ---
    # v7x: make sure there are >=2 grid steps so ("parallel",) shards across both TCs.
    # v6e/v5e (single TC): sweep batch_tile = 512/1024 for large B to amortize per-step cost.
    TB = min(batch_tile, max(8, _round_up(pl.cdiv(B, 2), 8)))
    TB = min(TB, _round_up(B, 8))
    Bp = _round_up(B, TB)
    if Bp != B:
        pad = Bp - B
        x = jnp.pad(x, ((0, pad), (0, 0)))
        eps = jnp.pad(eps, ((0, pad), (0, 0)))
        drop_mask = jnp.pad(drop_mask, ((0, pad), (0, 0)))
    # lane-pad eps with zeros (=> z pad lanes are exactly 0) and drop mask with ones
    if LZ != latent_dim:
        eps = jnp.pad(eps, ((0, 0), (0, LZ - latent_dim)))
    if HID_PAD != hid:
        drop_mask = jnp.pad(drop_mask, ((0, 0), (0, HID_PAD - hid)), constant_values=1.0)
    grid = (Bp // TB,)

    weight_keys = ("w1", "b1", "w23", "b23", "wz", "bz", "wd2", "bd2", "wc2", "bc2")
    weights = tuple(params[k] for k in weight_keys)
    inputs = (x, eps, drop_mask) + weights

    def batch_spec(cols):
        return pl.BlockSpec((TB, cols), lambda i: (i, 0))

    def resident_spec(arr):
        # constant block index => single DMA, parameter stays resident in VMEM.
        # (pipeline_mode=pl.Buffered(1) would halve the weight buffers, but VMEM is not a
        #  constraint at these tile sizes, so we keep the default safe path.)
        return pl.BlockSpec(arr.shape, lambda i: (0, 0))

    in_specs = ([batch_spec(input_dim), batch_spec(LZ), batch_spec(HID_PAD)]
                + [resident_spec(w) for w in weights])
    out_specs = (batch_spec(LZ), batch_spec(input_dim), batch_spec(CLS_PAD))
    out_shape = (jax.ShapeDtypeStruct((Bp, LZ), jnp.float32),
                 jax.ShapeDtypeStruct((Bp, input_dim), act_out_dtype),
                 jax.ShapeDtypeStruct((Bp, CLS_PAD), act_out_dtype))

    flops = 2 * Bp * (input_dim * ENC_H + ENC_H * (2 * LZ) + LZ * (DEC_H + HID_PAD)
                      + DEC_H * input_dim + HID_PAD * CLS_PAD)
    transcendentals = Bp * (LZ + input_dim + CLS_PAD)
    out_bytes = (4 * Bp * LZ
                 + jnp.dtype(act_out_dtype).itemsize * Bp * (input_dim + CLS_PAD))
    bytes_accessed = int(sum(int(a.size) * a.dtype.itemsize for a in inputs) + out_bytes)

    z_pad, recon, probs_pad = pl.pallas_call(
        vae_kernel,
        out_shape=out_shape,
        grid_spec=pltpu.PrefetchScalarGridSpec(
            num_scalar_prefetch=0,
            grid=grid,
            in_specs=in_specs,
            out_specs=out_specs),
        compiler_params=pltpu.CompilerParams(
            dimension_semantics=("parallel",)),   # batch axis -> both TCs on v7x
        cost_estimate=pl.CostEstimate(flops=flops,
                                      transcendentals=transcendentals,
                                      bytes_accessed=bytes_accessed),
    )(*inputs)

    z = z_pad[:B, :latent_dim]
    recon = recon[:B].reshape(-1, 1, input_dim)   # torch: z.reshape(-1, 1, output_dim)
    probs = probs_pad[:B, :n_class]               # drop the lane-padding columns
    return z, recon, probs


def _linear_params(key, fan_in, fan_out):
    # PyTorch nn.Linear default init: U(-1/sqrt(fan_in), 1/sqrt(fan_in)).
    kw, kb = jax.random.split(key)
    bound = 1.0 / jnp.sqrt(fan_in)
    w = jax.random.uniform(kw, (fan_in, fan_out), jnp.float32, -bound, bound)
    b = jax.random.uniform(kb, (1, fan_out), jnp.float32, -bound, bound)
    return w, b


def make_params(key, input_dim, latent_dim, n_class):
    hid = latent_dim // 2
    LZ = _round_up(latent_dim, 128)
    HID_PAD = _round_up(hid, 128)
    CLS_PAD = _round_up(n_class, 128)

    keys = jax.random.split(key, 7)
    w1, b1 = _linear_params(keys[0], input_dim, 512)              # enc.linear1
    w2, b2 = _linear_params(keys[1], 512, latent_dim)             # enc.linear2 (mu)
    w3, b3 = _linear_params(keys[2], 512, latent_dim)             # enc.linear3 (log sigma)
    wd1, bd1 = _linear_params(keys[3], latent_dim, 512)           # dec.linear1
    wd2, bd2 = _linear_params(keys[4], 512, input_dim)            # dec.linear2
    wc1, bc1 = _linear_params(keys[5], latent_dim, hid)           # clf[0]
    wc2, bc2 = _linear_params(keys[6], hid, n_class)              # clf[3]

    f32, bf16 = jnp.float32, jnp.bfloat16

    # Fused, lane-padded mu || log-sigma projection: (512, 2*LZ).
    # Pad lanes: mu weight/bias 0 -> mu=0; log-sigma weight/bias 0 -> sigma=1.
    w23 = jnp.zeros((512, 2 * LZ), f32)
    w23 = w23.at[:, :latent_dim].set(w2).at[:, LZ:LZ + latent_dim].set(w3)
    b23 = jnp.zeros((1, 2 * LZ), f32)
    b23 = b23.at[:, :latent_dim].set(b2).at[:, LZ:LZ + latent_dim].set(b3)

    # Fused decoder-hidden || classifier-hidden projection: (LZ, 512 + HID_PAD).
    # Pad latent rows are zero (z pad lanes are zero anyway); classifier pad cols are zero.
    wz = jnp.zeros((LZ, 512 + HID_PAD), f32)
    wz = wz.at[:latent_dim, :512].set(wd1).at[:latent_dim, 512:512 + hid].set(wc1)
    bz = jnp.zeros((1, 512 + HID_PAD), f32)
    bz = bz.at[:, :512].set(bd1).at[:, 512:512 + hid].set(bc1)

    # Lane-dense classifier output head: zero-pad weights, -1e30 bias on pad lanes
    # (softmax-safe; biases stay f32 so the trick is exact).
    wc2p = jnp.zeros((HID_PAD, CLS_PAD), f32).at[:hid, :n_class].set(wc2)
    bc2p = jnp.full((1, CLS_PAD), -1e30, f32).at[:, :n_class].set(bc2)

    return {
        "w1": w1.astype(bf16), "b1": b1,
        "w23": w23.astype(bf16), "b23": b23,
        "wz": wz.astype(bf16), "bz": bz,
        "wd2": wd2.astype(bf16), "bd2": bd2,
        "wc2": wc2p.astype(bf16), "bc2": bc2p,
    }


def vae_reference(x, eps, drop_mask, params, *, latent_dim, n_class):
    """Pure-JAX reference with the same bf16-matmul / f32-elementwise recipe."""
    f32, bf16 = jnp.float32, jnp.bfloat16

    def mm(a, w):
        return jnp.dot(a.astype(bf16), w, preferred_element_type=f32)

    LZ = params["wz"].shape[0]
    HID_PAD = params["wc2"].shape[0]
    eps_p = jnp.pad(eps, ((0, 0), (0, LZ - latent_dim)))
    drop_p = jnp.pad(drop_mask, ((0, 0), (0, HID_PAD - drop_mask.shape[1])),
                     constant_values=1.0)

    h = jnp.maximum(mm(x, params["w1"]) + params["b1"], 0.0)
    y = mm(h, params["w23"]) + params["b23"]
    mu, sigma = y[:, :LZ], jnp.exp(y[:, LZ:])
    z = mu + sigma * eps_p
    dc = jnp.maximum(mm(z, params["wz"]) + params["bz"], 0.0)
    d = dc[:, :512]
    c = dc[:, 512:] * drop_p
    recon = jax.nn.sigmoid(mm(d, params["wd2"]) + params["bd2"])
    probs = jax.nn.softmax(mm(c, params["wc2"]) + params["bc2"], axis=1)[:, :n_class]
    return z[:, :latent_dim], recon.reshape(-1, 1, x.shape[1]), probs


if __name__ == "__main__":
    # Small shapes consistent with the module: x is flattened from start_dim=1,
    # so take x as (B, H, W) with input_dim = H*W.
    B, H, W = 8, 16, 16
    input_dim = H * W          # 256
    latent_dim = 64
    n_class = 2

    key = jax.random.PRNGKey(0)
    k_x, k_eps, k_drop, k_params = jax.random.split(key, 4)

    x = jax.random.normal(k_x, (B, H, W), jnp.float32)
    x_flat = x.reshape(B, -1)                              # torch.flatten(x, start_dim=1)

    # Reparameterization noise (torch: self.N.sample(mu.shape)) drawn in JAX.
    eps = jax.random.normal(k_eps, (B, latent_dim), jnp.float32)

    # nn.Dropout(0.2) in training mode: Bernoulli keep mask scaled by 1/(1-p).
    keep_p = 0.8
    drop_mask = (jax.random.bernoulli(k_drop, keep_p, (B, latent_dim // 2))
                 .astype(jnp.float32) / keep_p)
    # TODO(synk): for eval-mode semantics, replace drop_mask with ones.

    params = make_params(k_params, input_dim, latent_dim, n_class)

    z, recon, probs = vae_forward(x_flat, eps, drop_mask, params, n_class=n_class)
    jax.block_until_ready((z, recon, probs))

    z_r, recon_r, probs_r = vae_reference(x_flat, eps, drop_mask, params,
                                          latent_dim=latent_dim, n_class=n_class)

    recon32 = recon.astype(jnp.float32)
    probs32 = probs.astype(jnp.float32)

    assert z.shape == (B, latent_dim)
    assert recon.shape == (B, 1, input_dim)
    assert probs.shape == (B, n_class)
    assert bool(jnp.all(jnp.isfinite(z)))
    assert bool(jnp.all((recon32 >= 0.0) & (recon32 <= 1.0 + 1e-2)))  # approx-recip + bf16 slack
    assert bool(jnp.allclose(jnp.sum(probs32, axis=1), 1.0, atol=1e-2))
    assert bool(jnp.allclose(z, z_r, atol=5e-2, rtol=5e-2))
    assert bool(jnp.allclose(recon32, recon_r, atol=5e-2, rtol=5e-2))
    assert bool(jnp.allclose(probs32, probs_r, atol=5e-2, rtol=5e-2))

    print("KERNEL_OK")
</pallas_src>

<mosaic_0001>
module attributes {stable_mosaic.version = 11 : i64} {
  func.func @vae_kernel(%arg0: i32, %arg1: memref<8x256xf32, #tpu.memory_space<vmem>>, %arg2: memref<8x128xf32, #tpu.memory_space<vmem>>, %arg3: memref<8x128xf32, #tpu.memory_space<vmem>>, %arg4: memref<256x512xbf16, #tpu.memory_space<vmem>>, %arg5: memref<1x512xf32, #tpu.memory_space<vmem>>, %arg6: memref<512x256xbf16, #tpu.memory_space<vmem>>, %arg7: memref<1x256xf32, #tpu.memory_space<vmem>>, %arg8: memref<128x640xbf16, #tpu.memory_space<vmem>>, %arg9: memref<1x640xf32, #tpu.memory_space<vmem>>, %arg10: memref<512x256xbf16, #tpu.memory_space<vmem>>, %arg11: memref<1x256xf32, #tpu.memory_space<vmem>>, %arg12: memref<128x128xbf16, #tpu.memory_space<vmem>>, %arg13: memref<1x128xf32, #tpu.memory_space<vmem>>, %arg14: memref<8x128xf32, #tpu.memory_space<vmem>>, %arg15: memref<8x256xbf16, #tpu.memory_space<vmem>>, %arg16: memref<8x128xbf16, #tpu.memory_space<vmem>>) attributes {dimension_semantics = [#tpu.dimension_semantics<parallel>], iteration_bounds = array<i64: 1>, scalar_prefetch = 0 : i64, scratch_operands = 0 : i64, tpu.core_type = #tpu.core_type<tc>, window_params = [{transform_indices = @transform_0, window_bounds = array<i64: 8, 256>}, {transform_indices = @transform_1, window_bounds = array<i64: 8, 128>}, {transform_indices = @transform_2, window_bounds = array<i64: 8, 128>}, {pipeline_mode = #tpu.pipeline_mode<synchronous>, transform_indices = @transform_3, window_bounds = array<i64: 256, 512>}, {pipeline_mode = #tpu.pipeline_mode<synchronous>, transform_indices = @transform_4, window_bounds = array<i64: 1, 512>}, {pipeline_mode = #tpu.pipeline_mode<synchronous>, transform_indices = @transform_5, window_bounds = array<i64: 512, 256>}, {pipeline_mode = #tpu.pipeline_mode<synchronous>, transform_indices = @transform_6, window_bounds = array<i64: 1, 256>}, {pipeline_mode = #tpu.pipeline_mode<synchronous>, transform_indices = @transform_7, window_bounds = array<i64: 128, 640>}, {pipeline_mode = #tpu.pipeline_mode<synchronous>, transform_indices = @transform_8, window_bounds = array<i64: 1, 640>}, {pipeline_mode = #tpu.pipeline_mode<synchronous>, transform_indices = @transform_9, window_bounds = array<i64: 512, 256>}, {pipeline_mode = #tpu.pipeline_mode<synchronous>, transform_indices = @transform_10, window_bounds = array<i64: 1, 256>}, {pipeline_mode = #tpu.pipeline_mode<synchronous>, transform_indices = @transform_11, window_bounds = array<i64: 128, 128>}, {pipeline_mode = #tpu.pipeline_mode<synchronous>, transform_indices = @transform_12, window_bounds = array<i64: 1, 128>}, {transform_indices = @transform_13, window_bounds = array<i64: 8, 128>}, {transform_indices = @transform_14, window_bounds = array<i64: 8, 256>}, {transform_indices = @transform_15, window_bounds = array<i64: 8, 128>}]} {
    %c0 = arith.constant 0 : index
    %c0_0 = arith.constant 0 : index
    %0 = vector.load %arg1[%c0, %c0_0] : memref<8x256xf32, #tpu.memory_space<vmem>>, vector<8x256xf32>
    %1 = arith.truncf %0 : vector<8x256xf32> to vector<8x256xbf16>
    %c0_1 = arith.constant 0 : index
    %c0_2 = arith.constant 0 : index
    %2 = vector.load %arg4[%c0_1, %c0_2] : memref<256x512xbf16, #tpu.memory_space<vmem>>, vector<256x512xbf16>
    %cst = arith.constant dense<0.000000e+00> : vector<8x512xf32>
    %3 = tpu.matmul %1, %2, %cst {dimension_numbers = #tpu.dot_dimension_numbers<[1], [0], [0], [1], [0, 0, 1, 1], [], []>} : vector<8x256xbf16>, vector<256x512xbf16>, vector<8x512xf32> -> vector<8x512xf32>
    %c0_3 = arith.constant 0 : index
    %c0_4 = arith.constant 0 : index
    %4 = vector.load %arg5[%c0_3, %c0_4] : memref<1x512xf32, #tpu.memory_space<vmem>>, vector<1x512xf32>
    %5 = vector.broadcast %4 : vector<1x512xf32> to vector<8x512xf32>
    %6 = arith.addf %3, %5 : vector<8x512xf32>
    %cst_5 = arith.constant 0.000000e+00 : f32
    %7 = vector.broadcast %cst_5 : f32 to vector<8x512xf32>
    %8 = arith.maximumf %6, %7 : vector<8x512xf32>
    %9 = arith.truncf %8 : vector<8x512xf32> to vector<8x512xbf16>
    %c0_6 = arith.constant 0 : index
    %c0_7 = arith.constant 0 : index
    %10 = vector.load %arg6[%c0_6, %c0_7] : memref<512x256xbf16, #tpu.memory_space<vmem>>, vector<512x256xbf16>
    %cst_8 = arith.constant dense<0.000000e+00> : vector<8x256xf32>
    %11 = tpu.matmul %9, %10, %cst_8 {dimension_numbers = #tpu.dot_dimension_numbers<[1], [0], [0], [1], [0, 0, 1, 1], [], []>} : vector<8x512xbf16>, vector<512x256xbf16>, vector<8x256xf32> -> vector<8x256xf32>
    %c0_9 = arith.constant 0 : index
    %c0_10 = arith.constant 0 : index
    %12 = vector.load %arg7[%c0_9, %c0_10] : memref<1x256xf32, #tpu.memory_space<vmem>>, vector<1x256xf32>
    %13 = vector.broadcast %12 : vector<1x256xf32> to vector<8x256xf32>
    %14 = arith.addf %11, %13 : vector<8x256xf32>
    %15 = vector.extract_strided_slice %14 {offsets = [0, 0], sizes = [8, 128], strides = [1, 1]} : vector<8x256xf32> to vector<8x128xf32>
    %16 = vector.extract_strided_slice %14 {offsets = [0, 128], sizes = [8, 128], strides = [1, 1]} : vector<8x256xf32> to vector<8x128xf32>
    %17 = math.exp %16 : vector<8x128xf32>
    %c0_11 = arith.constant 0 : index
    %c0_12 = arith.constant 0 : index
    %18 = vector.load %arg2[%c0_11, %c0_12] : memref<8x128xf32, #tpu.memory_space<vmem>>, vector<8x128xf32>
    %19 = arith.mulf %17, %18 : vector<8x128xf32>
    %20 = arith.addf %15, %19 : vector<8x128xf32>
    %c0_13 = arith.constant 0 : index
    %c0_14 = arith.constant 0 : index
    %21 = vector.load %arg14[%c0_13, %c0_14] : memref<8x128xf32, #tpu.memory_space<vmem>>, vector<8x128xf32>
    tpu.vector_store %arg14[%c0_13, %c0_14], %20 {strides = array<i32>} : memref<8x128xf32, #tpu.memory_space<vmem>>, vector<8x128xf32>,
    %22 = arith.truncf %20 : vector<8x128xf32> to vector<8x128xbf16>
    %c0_15 = arith.constant 0 : index
    %c0_16 = arith.constant 0 : index
    %23 = vector.load %arg8[%c0_15, %c0_16] : memref<128x640xbf16, #tpu.memory_space<vmem>>, vector<128x640xbf16>
    %cst_17 = arith.constant dense<0.000000e+00> : vector<8x640xf32>
    %24 = tpu.matmul %22, %23, %cst_17 {dimension_numbers = #tpu.dot_dimension_numbers<[1], [0], [0], [1], [0, 0, 1, 1], [], []>} : vector<8x128xbf16>, vector<128x640xbf16>, vector<8x640xf32> -> vector<8x640xf32>
    %c0_18 = arith.constant 0 : index
    %c0_19 = arith.constant 0 : index
    %25 = vector.load %arg9[%c0_18, %c0_19] : memref<1x640xf32, #tpu.memory_space<vmem>>, vector<1x640xf32>
    %26 = vector.broadcast %25 : vector<1x640xf32> to vector<8x640xf32>
    %27 = arith.addf %24, %26 : vector<8x640xf32>
    %cst_20 = arith.constant 0.000000e+00 : f32
    %28 = vector.broadcast %cst_20 : f32 to vector<8x640xf32>
    %29 = arith.maximumf %27, %28 : vector<8x640xf32>
    %30 = vector.extract_strided_slice %29 {offsets = [0, 0], sizes = [8, 512], strides = [1, 1]} : vector<8x640xf32> to vector<8x512xf32>
    %31 = arith.truncf %30 : vector<8x512xf32> to vector<8x512xbf16>
    %32 = vector.extract_strided_slice %29 {offsets = [0, 512], sizes = [8, 128], strides = [1, 1]} : vector<8x640xf32> to vector<8x128xf32>
    %c0_21 = arith.constant 0 : index
    %c0_22 = arith.constant 0 : index
    %33 = vector.load %arg3[%c0_21, %c0_22] : memref<8x128xf32, #tpu.memory_space<vmem>>, vector<8x128xf32>
    %34 = arith.mulf %32, %33 : vector<8x128xf32>
    %35 = arith.truncf %34 : vector<8x128xf32> to vector<8x128xbf16>
    %c0_23 = arith.constant 0 : index
    %c0_24 = arith.constant 0 : index
    %36 = vector.load %arg10[%c0_23, %c0_24] : memref<512x256xbf16, #tpu.memory_space<vmem>>, vector<512x256xbf16>
    %cst_25 = arith.constant dense<0.000000e+00> : vector<8x256xf32>
    %37 = tpu.matmul %31, %36, %cst_25 {dimension_numbers = #tpu.dot_dimension_numbers<[1], [0], [0], [1], [0, 0, 1, 1], [], []>} : vector<8x512xbf16>, vector<512x256xbf16>, vector<8x256xf32> -> vector<8x256xf32>
    %c0_26 = arith.constant 0 : index
    %c0_27 = arith.constant 0 : index
    %38 = vector.load %arg11[%c0_26, %c0_27] : memref<1x256xf32, #tpu.memory_space<vmem>>, vector<1x256xf32>
    %39 = vector.broadcast %38 : vector<1x256xf32> to vector<8x256xf32>
    %40 = arith.addf %37, %39 : vector<8x256xf32>
    %cst_28 = arith.constant 0.000000e+00 : f32
    %41 = vector.broadcast %cst_28 : f32 to vector<8x256xf32>
    %42 = arith.subf %41, %40 : vector<8x256xf32>
    %43 = math.exp %42 : vector<8x256xf32>
    %cst_29 = arith.constant 1.000000e+00 : f32
    %44 = vector.broadcast %cst_29 : f32 to vector<8x256xf32>
    %45 = arith.addf %44, %43 : vector<8x256xf32>
    %46 = tpu.reciprocal %45 {approx = true} : vector<8x256xf32> -> vector<8x256xf32>
    %47 = arith.truncf %46 : vector<8x256xf32> to vector<8x256xbf16>
    %c0_30 = arith.constant 0 : index
    %c0_31 = arith.constant 0 : index
    %48 = vector.load %arg15[%c0_30, %c0_31] : memref<8x256xbf16, #tpu.memory_space<vmem>>, vector<8x256xbf16>
    tpu.vector_store %arg15[%c0_30, %c0_31], %47 {strides = array<i32>} : memref<8x256xbf16, #tpu.memory_space<vmem>>, vector<8x256xbf16>,
    %c0_32 = arith.constant 0 : index
    %c0_33 = arith.constant 0 : index
    %49 = vector.load %arg12[%c0_32, %c0_33] : memref<128x128xbf16, #tpu.memory_space<vmem>>, vector<128x128xbf16>
    %cst_34 = arith.constant dense<0.000000e+00> : vector<8x128xf32>
    %50 = tpu.matmul %35, %49, %cst_34 {dimension_numbers = #tpu.dot_dimension_numbers<[1], [0], [0], [1], [0, 0, 1, 1], [], []>} : vector<8x128xbf16>, vector<128x128xbf16>, vector<8x128xf32> -> vector<8x128xf32>
    %c0_35 = arith.constant 0 : index
    %c0_36 = arith.constant 0 : index
    %51 = vector.load %arg13[%c0_35, %c0_36] : memref<1x128xf32, #tpu.memory_space<vmem>>, vector<1x128xf32>
    %52 = vector.broadcast %51 : vector<1x128xf32> to vector<8x128xf32>
    %53 = arith.addf %50, %52 : vector<8x128xf32>
    %cst_37 = arith.constant dense<0xFF800000> : vector<8xf32>
    %54 = vector.multi_reduction <maximumf>, %53, %cst_37 [1] : vector<8x128xf32> to vector<8xf32>
    %55 = vector.shape_cast %54 : vector<8xf32> to vector<8x1xf32>
    %56 = vector.broadcast %55 : vector<8x1xf32> to vector<8x128xf32>
    %57 = arith.subf %53, %56 : vector<8x128xf32>
    %58 = math.exp %57 : vector<8x128xf32>
    %cst_38 = arith.constant dense<0.000000e+00> : vector<8xf32>
    %59 = vector.multi_reduction <add>, %58, %cst_38 [1] : vector<8x128xf32> to vector<8xf32>
    %60 = vector.shape_cast %59 : vector<8xf32> to vector<8x1xf32>
    %61 = tpu.reciprocal %60 {approx = true} : vector<8x1xf32> -> vector<8x1xf32>
    %62 = vector.broadcast %61 : vector<8x1xf32> to vector<8x128xf32>
    %63 = arith.mulf %58, %62 : vector<8x128xf32>
    %64 = arith.truncf %63 : vector<8x128xf32> to vector<8x128xbf16>
    %c0_39 = arith.constant 0 : index
    %c0_40 = arith.constant 0 : index
    %65 = vector.load %arg16[%c0_39, %c0_40] : memref<8x128xbf16, #tpu.memory_space<vmem>>, vector<8x128xbf16>
    tpu.vector_store %arg16[%c0_39, %c0_40], %64 {strides = array<i32>} : memref<8x128xbf16, #tpu.memory_space<vmem>>, vector<8x128xbf16>,
    return
  }
  func.func @transform_0(%arg0: i32) -> (i32, i32) {
    %c0_i32 = arith.constant 0 : i32
    %c0_i32_0 = arith.constant 0 : i32
    return %arg0, %c0_i32 : i32, i32
  }
  func.func @transform_1(%arg0: i32) -> (i32, i32) {
    %c0_i32 = arith.constant 0 : i32
    %c0_i32_0 = arith.constant 0 : i32
    return %arg0, %c0_i32 : i32, i32
  }
  func.func @transform_2(%arg0: i32) -> (i32, i32) {
    %c0_i32 = arith.constant 0 : i32
    %c0_i32_0 = arith.constant 0 : i32
    return %arg0, %c0_i32 : i32, i32
  }
  func.func @transform_3(%arg0: i32) -> (i32, i32) {
    %c0_i32 = arith.constant 0 : i32
    %c0_i32_0 = arith.constant 0 : i32
    %c0_i32_1 = arith.constant 0 : i32
    return %c0_i32, %c0_i32_0 : i32, i32
  }
  func.func @transform_4(%arg0: i32) -> (i32, i32) {
    %c0_i32 = arith.constant 0 : i32
    %c0_i32_0 = arith.constant 0 : i32
    %c0_i32_1 = arith.constant 0 : i32
    return %c0_i32, %c0_i32_0 : i32, i32
  }
  func.func @transform_5(%arg0: i32) -> (i32, i32) {
    %c0_i32 = arith.constant 0 : i32
    %c0_i32_0 = arith.constant 0 : i32
    %c0_i32_1 = arith.constant 0 : i32
    return %c0_i32, %c0_i32_0 : i32, i32
  }
  func.func @transform_6(%arg0: i32) -> (i32, i32) {
    %c0_i32 = arith.constant 0 : i32
    %c0_i32_0 = arith.constant 0 : i32
    %c0_i32_1 = arith.constant 0 : i32
    return %c0_i32, %c0_i32_0 : i32, i32
  }
  func.func @transform_7(%arg0: i32) -> (i32, i32) {
    %c0_i32 = arith.constant 0 : i32
    %c0_i32_0 = arith.constant 0 : i32
    %c0_i32_1 = arith.constant 0 : i32
    return %c0_i32, %c0_i32_0 : i32, i32
  }
  func.func @transform_8(%arg0: i32) -> (i32, i32) {
    %c0_i32 = arith.constant 0 : i32
    %c0_i32_0 = arith.constant 0 : i32
    %c0_i32_1 = arith.constant 0 : i32
    return %c0_i32, %c0_i32_0 : i32, i32
  }
  func.func @transform_9(%arg0: i32) -> (i32, i32) {
    %c0_i32 = arith.constant 0 : i32
    %c0_i32_0 = arith.constant 0 : i32
    %c0_i32_1 = arith.constant 0 : i32
    return %c0_i32, %c0_i32_0 : i32, i32
  }
  func.func @transform_10(%arg0: i32) -> (i32, i32) {
    %c0_i32 = arith.constant 0 : i32
    %c0_i32_0 = arith.constant 0 : i32
    %c0_i32_1 = arith.constant 0 : i32
    return %c0_i32, %c0_i32_0 : i32, i32
  }
  func.func @transform_11(%arg0: i32) -> (i32, i32) {
    %c0_i32 = arith.constant 0 : i32
    %c0_i32_0 = arith.constant 0 : i32
    %c0_i32_1 = arith.constant 0 : i32
    return %c0_i32, %c0_i32_0 : i32, i32
  }
  func.func @transform_12(%arg0: i32) -> (i32, i32) {
    %c0_i32 = arith.constant 0 : i32
    %c0_i32_0 = arith.constant 0 : i32
    %c0_i32_1 = arith.constant 0 : i32
    return %c0_i32, %c0_i32_0 : i32, i32
  }
  func.func @transform_13(%arg0: i32) -> (i32, i32) {
    %c0_i32 = arith.constant 0 : i32
    %c0_i32_0 = arith.constant 0 : i32
    return %arg0, %c0_i32 : i32, i32
  }
  func.func @transform_14(%arg0: i32) -> (i32, i32) {
    %c0_i32 = arith.constant 0 : i32
    %c0_i32_0 = arith.constant 0 : i32
    return %arg0, %c0_i32 : i32, i32
  }
  func.func @transform_15(%arg0: i32) -> (i32, i32) {
    %c0_i32 = arith.constant 0 : i32
    %c0_i32_0 = arith.constant 0 : i32
    return %arg0, %c0_i32 : i32, i32
  }
}

</mosaic_0001>

<llo_original>
// kernel: tpu_custom_call.1
$region0: #{tpu_custom_call.1}
  #allocation0 [shape = 'u32[]', space=smem, size = 0x4, offset = 0x4, fixed_abs, tag = 'smem constant byte address 0x4 - core index']
  #allocation1 [shape = 'u32[144,128]{1,0:T(1,128)}', space=vmem, size = 0x12000, scoped, tag = 'internal scratch']
  %s0 = inlined_call_operand.hbm [shape: f32[8,256], index: 0, kind: input, shape index: {}]
  %s1 = inlined_call_operand.hbm [shape: f32[8,128], index: 1, kind: input, shape index: {}]
  %s2 = inlined_call_operand.hbm [shape: f32[8,128], index: 2, kind: input, shape index: {}]
  %s3 = inlined_call_operand.hbm [shape: bf16[256,512], index: 3, kind: input, shape index: {}]
  %s4 = inlined_call_operand.vmem [shape: f32[1,512], index: 4, kind: input, shape index: {}]
  %s5 = inlined_call_operand.hbm [shape: bf16[512,256], index: 5, kind: input, shape index: {}]
  %s6 = inlined_call_operand.vmem [shape: f32[1,256], index: 6, kind: input, shape index: {}]
  %s7 = inlined_call_operand.hbm [shape: bf16[128,640], index: 7, kind: input, shape index: {}]
  %s8 = inlined_call_operand.vmem [shape: f32[1,640], index: 8, kind: input, shape index: {}]
  %s9 = inlined_call_operand.hbm [shape: bf16[512,256], index: 9, kind: input, shape index: {}]
  %s10 = inlined_call_operand.vmem [shape: f32[1,256], index: 10, kind: input, shape index: {}]
  %s11 = inlined_call_operand.hbm [shape: bf16[128,128], index: 11, kind: input, shape index: {}]
  %s12 = inlined_call_operand.vmem [shape: f32[1,128], index: 12, kind: input, shape index: {}]
  %s13 = inlined_call_operand.hbm [shape: f32[8,128], index: 13, kind: output, shape index: {0}]
  %s14 = inlined_call_operand.hbm [shape: bf16[8,256], index: 14, kind: output, shape index: {1}]
  %s15 = inlined_call_operand.hbm [shape: bf16[8,128], index: 15, kind: output, shape index: {2}]
  %16 = xla_tuple %s13, %s14, %s15
  %s17 = sld [smem:[#allocation0]]
  $region110: #{tpu_custom_call.1} parent=0
    _
  %s19 = ssub.s32 1, %s17
  %s20 = scalar_select 0, %s19, %s17
  $region1: #{tpu_custom_call.1} parent=0
    #allocation2 [shape = 'u8[8192]{0}', space=vmem, size = 0x2000, scoped, tag = 'input window, operand 0, single buffered']
    #allocation3 [shape = 's32[1]{0}', space=sflag, size = 0x4, scoped, tag = 'scoped memory for tpu_custom_call.1']
    #allocation4 [shape = 's32[1]{0}', space=sflag, size = 0x4, scoped, tag = 'scoped memory for tpu_custom_call.1']
    #allocation5 [shape = 'u8[4096]{0}', space=vmem, size = 0x1000, scoped, tag = 'input window, operand 1, single buffered']
    #allocation6 [shape = 's32[1]{0}', space=sflag, size = 0x4, scoped, tag = 'scoped memory for tpu_custom_call.1']
    #allocation7 [shape = 'u8[4096]{0}', space=vmem, size = 0x1000, scoped, tag = 'input window, operand 2, single buffered']
    #allocation8 [shape = 'u8[262144]{0}', space=vmem, size = 0x40000, scoped, tag = 'input window, operand 3, single buffered']
    #allocation9 [shape = 's32[1]{0}', space=sflag, size = 0x4, scoped, tag = 'scoped memory for tpu_custom_call.1']
    #allocation10 [shape = 'u8[262144]{0}', space=vmem, size = 0x40000, scoped, tag = 'input window, operand 5, single buffered']
    #allocation11 [shape = 'u8[163840]{0}', space=vmem, size = 0x28000, scoped, tag = 'input window, operand 7, single buffered']
    #allocation12 [shape = 's32[1]{0}', space=sflag, size = 0x4, scoped, tag = 'scoped memory for tpu_custom_call.1']
    #allocation13 [shape = 'u8[262144]{0}', space=vmem, size = 0x40000, scoped, tag = 'input window, operand 9, single buffered']
    #allocation14 [shape = 'u8[32768]{0}', space=vmem, size = 0x8000, scoped, tag = 'input window, operand 11, single buffered']
    #allocation15 [shape = 's32[1]{0}', space=sflag, size = 0x4, scoped, tag = 'scoped memory for tpu_custom_call.1']
    #allocation16 [shape = 'u8[4096]{0}', space=vmem, size = 0x1000, scoped, tag = 'output window, operand 0, single buffered']
    #allocation17 [shape = 'u8[4096]{0}', space=vmem, size = 0x1000, scoped, tag = 'output window, operand 1, single buffered']
    #allocation18 [shape = 's32[1]{0}', space=sflag, size = 0x4, scoped, tag = 'scoped memory for tpu_custom_call.1']
    #allocation19 [shape = 'u8[2048]{0}', space=vmem, size = 0x800, scoped, tag = 'output window, operand 2, single buffered']
    %21 = vsyncpa [#allocation3], 0
    %22 = vsyncpa [#allocation6], 0
    %23 = vsyncpa [#allocation9], 0
    %24 = vsyncpa [#allocation12], 0
    %25 = vsyncpa [#allocation15], 0
    %26 = vsyncpa [#allocation4], 0
    %27 = vsyncpa [#allocation18], 0
    // Predicated region
    $region2: #{tpu_custom_call.1} parent=1 // pred_check
      _
    $region3: #{tpu_custom_call.1} parent=1 // pred_check_branch
      %29 = sbr.rel (0) target = $region5
    $region4: #{tpu_custom_call.1} parent=1 // pred_region
      %s31 = ssub.s32 256, 256
      %32 = vsyncadd [#allocation3], %s31
      %s34 = sshll.u32 [#allocation2], 4
      %s35 = int_to_ptr.vmem [resolvable:$true] %s34
      %37 = dma.hbm_to_vmem [thread:$0]  %s0, 256, %s35, [#allocation3]
    $region5: #{tpu_custom_call.1} parent=1 // pred_fallthru
      _
    // Predicated region
    $region6: #{tpu_custom_call.1} parent=1 // pred_check
      _
    $region7: #{tpu_custom_call.1} parent=1 // pred_check_branch
      %39 = sbr.rel (0) target = $region9
    $region8: #{tpu_custom_call.1} parent=1 // pred_region
      %s41 = ssub.s32 128, 128
      %42 = vsyncadd [#allocation6], %s41
      %s44 = sshll.u32 [#allocation5], 4
      %s45 = int_to_ptr.vmem [resolvable:$true] %s44
      %47 = dma.hbm_to_vmem [thread:$0]  %s1, 128, %s45, [#allocation6]
    $region9: #{tpu_custom_call.1} parent=1 // pred_fallthru
      _
    // Predicated region
    $region10: #{tpu_custom_call.1} parent=1 // pred_check
      _
    $region11: #{tpu_custom_call.1} parent=1 // pred_check_branch
      %49 = sbr.rel (0) target = $region13
    $region12: #{tpu_custom_call.1} parent=1 // pred_region
      %s51 = ssub.s32 128, 128
      %52 = vsyncadd [#allocation6], %s51
      %s54 = sshll.u32 [#allocation7], 4
      %s55 = int_to_ptr.vmem [resolvable:$true] %s54
      %57 = dma.hbm_to_vmem [thread:$0]  %s2, 128, %s55, [#allocation6]
    $region13: #{tpu_custom_call.1} parent=1 // pred_fallthru
      _
    // Predicated region
    $region14: #{tpu_custom_call.1} parent=1 // pred_check
      _
    $region15: #{tpu_custom_call.1} parent=1 // pred_check_branch
      %59 = sbr.rel (0) target = $region17
    $region16: #{tpu_custom_call.1} parent=1 // pred_region
      %s61 = ssub.s32 8192, 8192
      %62 = vsyncadd [#allocation9], %s61
      %s63 = sshll.u32 [#allocation8], 4
      %s64 = int_to_ptr.vmem [resolvable:$true] %s63
      %69 = dma.hbm_to_vmem [thread:$0]  %s3, 8192, %s64, [#allocation9], 256, 256, 16
    $region17: #{tpu_custom_call.1} parent=1 // pred_fallthru
      _
    // Predicated region
    $region18: #{tpu_custom_call.1} parent=1 // pred_check
      _
    $region19: #{tpu_custom_call.1} parent=1 // pred_check_branch
      %71 = sbr.rel (0) target = $region21
    $region20: #{tpu_custom_call.1} parent=1 // pred_region
      _
    $region21: #{tpu_custom_call.1} parent=1 // pred_fallthru
      _
    // Predicated region
    $region22: #{tpu_custom_call.1} parent=1 // pred_check
      _
    $region23: #{tpu_custom_call.1} parent=1 // pred_check_branch
      %73 = sbr.rel (0) target = $region25
    $region24: #{tpu_custom_call.1} parent=1 // pred_region
      %s75 = ssub.s32 8192, 8192
      %76 = vsyncadd [#allocation9], %s75
      %s77 = sshll.u32 [#allocation10], 4
      %s78 = int_to_ptr.vmem [resolvable:$true] %s77
      %83 = dma.hbm_to_vmem [thread:$0]  %s5, 8192, %s78, [#allocation9], 128, 128, 8
    $region25: #{tpu_custom_call.1} parent=1 // pred_fallthru
      _
    // Predicated region
    $region26: #{tpu_custom_call.1} parent=1 // pred_check
      _
    $region27: #{tpu_custom_call.1} parent=1 // pred_check_branch
      %85 = sbr.rel (0) target = $region29
    $region28: #{tpu_custom_call.1} parent=1 // pred_region
      _
    $region29: #{tpu_custom_call.1} parent=1 // pred_fallthru
      _
    // Predicated region
    $region30: #{tpu_custom_call.1} parent=1 // pred_check
      _
    $region31: #{tpu_custom_call.1} parent=1 // pred_check_branch
      %87 = sbr.rel (0) target = $region33
    $region32: #{tpu_custom_call.1} parent=1 // pred_region
      %s89 = ssub.s32 5120, 5120
      %90 = vsyncadd [#allocation12], %s89
      %s91 = sshll.u32 [#allocation11], 4
      %s92 = int_to_ptr.vmem [resolvable:$true] %s91
      %97 = dma.hbm_to_vmem [thread:$0]  %s7, 5120, %s92, [#allocation12], 320, 320, 20
    $region33: #{tpu_custom_call.1} parent=1 // pred_fallthru
      _
    // Predicated region
    $region34: #{tpu_custom_call.1} parent=1 // pred_check
      _
    $region35: #{tpu_custom_call.1} parent=1 // pred_check_branch
      %99 = sbr.rel (0) target = $region37
    $region36: #{tpu_custom_call.1} parent=1 // pred_region
      _
    $region37: #{tpu_custom_call.1} parent=1 // pred_fallthru
      _
    // Predicated region
    $region38: #{tpu_custom_call.1} parent=1 // pred_check
      _
    $region39: #{tpu_custom_call.1} parent=1 // pred_check_branch
      %101 = sbr.rel (0) target = $region41
    $region40: #{tpu_custom_call.1} parent=1 // pred_region
      %s103 = ssub.s32 8192, 8192
      %104 = vsyncadd [#allocation12], %s103
      %s105 = sshll.u32 [#allocation13], 4
      %s106 = int_to_ptr.vmem [resolvable:$true] %s105
      %111 = dma.hbm_to_vmem [thread:$0]  %s9, 8192, %s106, [#allocation12], 128, 128, 8
    $region41: #{tpu_custom_call.1} parent=1 // pred_fallthru
      _
    // Predicated region
    $region42: #{tpu_custom_call.1} parent=1 // pred_check
      _
    $region43: #{tpu_custom_call.1} parent=1 // pred_check_branch
      %113 = sbr.rel (0) target = $region45
    $region44: #{tpu_custom_call.1} parent=1 // pred_region
      _
    $region45: #{tpu_custom_call.1} parent=1 // pred_fallthru
      _
    // Predicated region
    $region46: #{tpu_custom_call.1} parent=1 // pred_check
      _
    $region47: #{tpu_custom_call.1} parent=1 // pred_check_branch
      %115 = sbr.rel (0) target = $region49
    $region48: #{tpu_custom_call.1} parent=1 // pred_region
      %s117 = ssub.s32 1024, 1024
      %118 = vsyncadd [#allocation15], %s117
      %s119 = sshll.u32 [#allocation14], 4
      %s120 = int_to_ptr.vmem [resolvable:$true] %s119
      %125 = dma.hbm_to_vmem [thread:$0]  %s11, 1024, %s120, [#allocation15], 64, 64, 4
    $region49: #{tpu_custom_call.1} parent=1 // pred_fallthru
      _
    // Predicated region
    $region50: #{tpu_custom_call.1} parent=1 // pred_check
      _
    $region51: #{tpu_custom_call.1} parent=1 // pred_check_branch
      %127 = sbr.rel (0) target = $region53
    $region52: #{tpu_custom_call.1} parent=1 // pred_region
      _
    $region53: #{tpu_custom_call.1} parent=1 // pred_fallthru
      _
    // Predicated region
    $region54: #{tpu_custom_call.1} parent=1 // pred_check
      _
    $region55: #{tpu_custom_call.1} parent=1 // pred_check_branch
      %129 = sbr.rel (0) target = $region57
    $region56: #{tpu_custom_call.1} parent=1 // pred_region
      %130 = dma.done [#allocation3], 256
    $region57: #{tpu_custom_call.1} parent=1 // pred_fallthru
      _
    // Predicated region
    $region58: #{tpu_custom_call.1} parent=1 // pred_check
      _
    $region59: #{tpu_custom_call.1} parent=1 // pred_check_branch
      %132 = sbr.rel (0) target = $region61
    $region60: #{tpu_custom_call.1} parent=1 // pred_region
      %133 = dma.done [#allocation6], 128
    $region61: #{tpu_custom_call.1} parent=1 // pred_fallthru
      _
    // Predicated region
    $region62: #{tpu_custom_call.1} parent=1 // pred_check
      _
    $region63: #{tpu_custom_call.1} parent=1 // pred_check_branch
      %135 = sbr.rel (0) target = $region65
    $region64: #{tpu_custom_call.1} parent=1 // pred_region
      %136 = dma.done [#allocation6], 128
    $region65: #{tpu_custom_call.1} parent=1 // pred_fallthru
      _
    // Predicated region
    $region66: #{tpu_custom_call.1} parent=1 // pred_check
      _
    $region67: #{tpu_custom_call.1} parent=1 // pred_check_branch
      %138 = sbr.rel (0) target = $region69
    $region68: #{tpu_custom_call.1} parent=1 // pred_region
      %139 = dma.done [#allocation9], 8192
    $region69: #{tpu_custom_call.1} parent=1 // pred_fallthru
      _
    // Predicated region
    $region70: #{tpu_custom_call.1} parent=1 // pred_check
      _
    $region71: #{tpu_custom_call.1} parent=1 // pred_check_branch
      %141 = sbr.rel (0) target = $region73
    $region72: #{tpu_custom_call.1} parent=1 // pred_region
      %142 = dma.done [#allocation9], 8192
    $region73: #{tpu_custom_call.1} parent=1 // pred_fallthru
      _
    // Predicated region
    $region74: #{tpu_custom_call.1} parent=1 // pred_check
      _
    $region75: #{tpu_custom_call.1} parent=1 // pred_check_branch
      %144 = sbr.rel (0) target = $region77
    $region76: #{tpu_custom_call.1} parent=1 // pred_region
      %145 = dma.done [#allocation12], 5120
    $region77: #{tpu_custom_call.1} parent=1 // pred_fallthru
      _
    // Predicated region
    $region78: #{tpu_custom_call.1} parent=1 // pred_check
      _
    $region79: #{tpu_custom_call.1} parent=1 // pred_check_branch
      %147 = sbr.rel (0) target = $region81
    $region80: #{tpu_custom_call.1} parent=1 // pred_region
      %148 = dma.done [#allocation12], 8192
    $region81: #{tpu_custom_call.1} parent=1 // pred_fallthru
      _
    // Predicated region
    $region82: #{tpu_custom_call.1} parent=1 // pred_check
      _
    $region83: #{tpu_custom_call.1} parent=1 // pred_check_branch
      %150 = sbr.rel (0) target = $region85
    $region84: #{tpu_custom_call.1} parent=1 // pred_region
      %151 = dma.done [#allocation15], 1024
    $region85: #{tpu_custom_call.1} parent=1 // pred_fallthru
      _
    %v153 = vld [vmem:[#allocation2] sm:$0xff]
    %v154 = vld [vmem:[#allocation2 + $0x8] sm:$0xff]
    %v155 = vpack.c.bf16 %v153, %v153
    %v156 = vpack.c.bf16 %v154, %v154
    %v157 = vld [vmem:[#allocation8] sm:$0xff]
    %v158 = vld [vmem:[#allocation8 + $0x8] sm:$0xff]
    %v159 = vld [vmem:[#allocation8 + $0x10] sm:$0xff]
    %v160 = vld [vmem:[#allocation8 + $0x18] sm:$0xff]
    %v161 = vld [vmem:[#allocation8 + $0x20] sm:$0xff]
    %v162 = vld [vmem:[#allocation8 + $0x28] sm:$0xff]
    %v163 = vld [vmem:[#allocation8 + $0x30] sm:$0xff]
    %v164 = vld [vmem:[#allocation8 + $0x38] sm:$0xff]
    %v165 = vld [vmem:[#allocation8 + $0x40] sm:$0xff]
    %v166 = vld [vmem:[#allocation8 + $0x48] sm:$0xff]
    %v167 = vld [vmem:[#allocation8 + $0x50] sm:$0xff]
    %v168 = vld [vmem:[#allocation8 + $0x58] sm:$0xff]
    %v169 = vld [vmem:[#allocation8 + $0x60] sm:$0xff]
    %v170 = vld [vmem:[#allocation8 + $0x68] sm:$0xff]
    %v171 = vld [vmem:[#allocation8 + $0x70] sm:$0xff]
    %v172 = vld [vmem:[#allocation8 + $0x78] sm:$0xff]
    %v173 = vld [vmem:[#allocation8 + $0x80] sm:$0xff]
    %v174 = vld [vmem:[#allocation8 + $0x88] sm:$0xff]
    %v175 = vld [vmem:[#allocation8 + $0x90] sm:$0xff]
    %v176 = vld [vmem:[#allocation8 + $0x98] sm:$0xff]
    %v177 = vld [vmem:[#allocation8 + $0xa0] sm:$0xff]
    %v178 = vld [vmem:[#allocation8 + $0xa8] sm:$0xff]
    %v179 = vld [vmem:[#allocation8 + $0xb0] sm:$0xff]
    %v180 = vld [vmem:[#allocation8 + $0xb8] sm:$0xff]
    %v181 = vld [vmem:[#allocation8 + $0xc0] sm:$0xff]
    %v182 = vld [vmem:[#allocation8 + $0xc8] sm:$0xff]
    %v183 = vld [vmem:[#allocation8 + $0xd0] sm:$0xff]
    %v184 = vld [vmem:[#allocation8 + $0xd8] sm:$0xff]
    %v185 = vld [vmem:[#allocation8 + $0xe0] sm:$0xff]
    %v186 = vld [vmem:[#allocation8 + $0xe8] sm:$0xff]
    %v187 = vld [vmem:[#allocation8 + $0xf0] sm:$0xff]
    %v188 = vld [vmem:[#allocation8 + $0xf8] sm:$0xff]
    %v189 = vld [vmem:[#allocation8 + $0x100] sm:$0xff]
    %v190 = vld [vmem:[#allocation8 + $0x108] sm:$0xff]
    %v191 = vld [vmem:[#allocation8 + $0x110] sm:$0xff]
    %v192 = vld [vmem:[#allocation8 + $0x118] sm:$0xff]
    %v193 = vld [vmem:[#allocation8 + $0x120] sm:$0xff]
    %v194 = vld [vmem:[#allocation8 + $0x128] sm:$0xff]
    %v195 = vld [vmem:[#allocation8 + $0x130] sm:$0xff]
    %v196 = vld [vmem:[#allocation8 + $0x138] sm:$0xff]
    %v197 = vld [vmem:[#allocation8 + $0x140] sm:$0xff]
    %v198 = vld [vmem:[#allocation8 + $0x148] sm:$0xff]
    %v199 = vld [vmem:[#allocation8 + $0x150] sm:$0xff]
    %v200 = vld [vmem:[#allocation8 + $0x158] sm:$0xff]
    %v201 = vld [vmem:[#allocation8 + $0x160] sm:$0xff]
    %v202 = vld [vmem:[#allocation8 + $0x168] sm:$0xff]
    %v203 = vld [vmem:[#allocation8 + $0x170] sm:$0xff]
    %v204 = vld [vmem:[#allocation8 + $0x178] sm:$0xff]
    %v205 = vld [vmem:[#allocation8 + $0x180] sm:$0xff]
    %v206 = vld [vmem:[#allocation8 + $0x188] sm:$0xff]
    %v207 = vld [vmem:[#allocation8 + $0x190] sm:$0xff]
    %v208 = vld [vmem:[#allocation8 + $0x198] sm:$0xff]
    %v209 = vld [vmem:[#allocation8 + $0x1a0] sm:$0xff]
    %v210 = vld [vmem:[#allocation8 + $0x1a8] sm:$0xff]
    %v211 = vld [vmem:[#allocation8 + $0x1b0] sm:$0xff]
    %v212 = vld [vmem:[#allocation8 + $0x1b8] sm:$0xff]
    %v213 = vld [vmem:[#allocation8 + $0x1c0] sm:$0xff]
    %v214 = vld [vmem:[#allocation8 + $0x1c8] sm:$0xff]
    %v215 = vld [vmem:[#allocation8 + $0x1d0] sm:$0xff]
    %v216 = vld [vmem:[#allocation8 + $0x1d8] sm:$0xff]
    %v217 = vld [vmem:[#allocation8 + $0x1e0] sm:$0xff]
    %v218 = vld [vmem:[#allocation8 + $0x1e8] sm:$0xff]
    %v219 = vld [vmem:[#allocation8 + $0x1f0] sm:$0xff]
    %v220 = vld [vmem:[#allocation8 + $0x1f8] sm:$0xff]
    %v221 = vld [vmem:[%s4] sm:$0xf]
    %v223 = vlaneseq
    %v224 = vshrl.u32 %v223, 7
    %v225 = vsub.s32 0, %v224
    %v226 = vrot.slane %v221, %v225
    %v227 = vlaneseq
    %v228 = vshrl.u32 %v227, 7
    %v229 = vsub.s32 1, %v228
    %v230 = vrot.slane %v221, %v229
    %v231 = vlaneseq
    %v232 = vshrl.u32 %v231, 7
    %v233 = vsub.s32 2, %v232
    %v234 = vrot.slane %v221, %v233
    %v235 = vlaneseq
    %v236 = vshrl.u32 %v235, 7
    %v237 = vsub.s32 3, %v236
    %v238 = vrot.slane %v221, %v237
    %v307 = vunpack.c.l.b16 %v157
    %v308 = vunpack.c.h.b16 %v157
    %v309 = vunpack.c.l.b16 %v158
    %v310 = vunpack.c.h.b16 %v158
    %v311 = vunpack.c.l.b16 %v159
    %v312 = vunpack.c.h.b16 %v159
    %v313 = vunpack.c.l.b16 %v160
    %v314 = vunpack.c.h.b16 %v160
    %v315 = vunpack.c.l.b16 %v161
    %v316 = vunpack.c.h.b16 %v161
    %v317 = vunpack.c.l.b16 %v162
    %v318 = vunpack.c.h.b16 %v162
    %v319 = vunpack.c.l.b16 %v163
    %v320 = vunpack.c.h.b16 %v163
    %v321 = vunpack.c.l.b16 %v164
    %v322 = vunpack.c.h.b16 %v164
    %v323 = vunpack.c.l.b16 %v165
    %v324 = vunpack.c.h.b16 %v165
    %v325 = vunpack.c.l.b16 %v166
    %v326 = vunpack.c.h.b16 %v166
    %v327 = vunpack.c.l.b16 %v167
    %v328 = vunpack.c.h.b16 %v167
    %v329 = vunpack.c.l.b16 %v168
    %v330 = vunpack.c.h.b16 %v168
    %v331 = vunpack.c.l.b16 %v169
    %v332 = vunpack.c.h.b16 %v169
    %v333 = vunpack.c.l.b16 %v170
    %v334 = vunpack.c.h.b16 %v170
    %v335 = vunpack.c.l.b16 %v171
    %v336 = vunpack.c.h.b16 %v171
    %v337 = vunpack.c.l.b16 %v172
    %v338 = vunpack.c.h.b16 %v172
    %v339 = vunpack.c.l.b16 %v173
    %v340 = vunpack.c.h.b16 %v173
    %v341 = vunpack.c.l.b16 %v174
    %v342 = vunpack.c.h.b16 %v174
    %v343 = vunpack.c.l.b16 %v175
    %v344 = vunpack.c.h.b16 %v175
    %v345 = vunpack.c.l.b16 %v176
    %v346 = vunpack.c.h.b16 %v176
    %v347 = vunpack.c.l.b16 %v177
    %v348 = vunpack.c.h.b16 %v177
    %v349 = vunpack.c.l.b16 %v178
    %v350 = vunpack.c.h.b16 %v178
    %v351 = vunpack.c.l.b16 %v179
    %v352 = vunpack.c.h.b16 %v179
    %v353 = vunpack.c.l.b16 %v180
    %v354 = vunpack.c.h.b16 %v180
    %v355 = vunpack.c.l.b16 %v181
    %v356 = vunpack.c.h.b16 %v181
    %v357 = vunpack.c.l.b16 %v182
    %v358 = vunpack.c.h.b16 %v182
    %v359 = vunpack.c.l.b16 %v183
    %v360 = vunpack.c.h.b16 %v183
    %v361 = vunpack.c.l.b16 %v184
    %v362 = vunpack.c.h.b16 %v184
    %v363 = vunpack.c.l.b16 %v185
    %v364 = vunpack.c.h.b16 %v185
    %v365 = vunpack.c.l.b16 %v186
    %v366 = vunpack.c.h.b16 %v186
    %v367 = vunpack.c.l.b16 %v187
    %v368 = vunpack.c.h.b16 %v187
    %v369 = vunpack.c.l.b16 %v188
    %v370 = vunpack.c.h.b16 %v188
    %v371 = vunpack.c.l.b16 %v189
    %v372 = vunpack.c.h.b16 %v189
    %v373 = vunpack.c.l.b16 %v190
    %v374 = vunpack.c.h.b16 %v190
    %v375 = vunpack.c.l.b16 %v191
    %v376 = vunpack.c.h.b16 %v191
    %v377 = vunpack.c.l.b16 %v192
    %v378 = vunpack.c.h.b16 %v192
    %v379 = vunpack.c.l.b16 %v193
    %v380 = vunpack.c.h.b16 %v193
    %v381 = vunpack.c.l.b16 %v194
    %v382 = vunpack.c.h.b16 %v194
    %v383 = vunpack.c.l.b16 %v195
    %v384 = vunpack.c.h.b16 %v195
    %v385 = vunpack.c.l.b16 %v196
    %v386 = vunpack.c.h.b16 %v196
    %v387 = vunpack.c.l.b16 %v197
    %v388 = vunpack.c.h.b16 %v197
    %v389 = vunpack.c.l.b16 %v198
    %v390 = vunpack.c.h.b16 %v198
    %v391 = vunpack.c.l.b16 %v199
    %v392 = vunpack.c.h.b16 %v199
    %v393 = vunpack.c.l.b16 %v200
    %v394 = vunpack.c.h.b16 %v200
    %v395 = vunpack.c.l.b16 %v201
    %v396 = vunpack.c.h.b16 %v201
    %v397 = vunpack.c.l.b16 %v202
    %v398 = vunpack.c.h.b16 %v202
    %v399 = vunpack.c.l.b16 %v203
    %v400 = vunpack.c.h.b16 %v203
    %v401 = vunpack.c.l.b16 %v204
    %v402 = vunpack.c.h.b16 %v204
    %v403 = vunpack.c.l.b16 %v205
    %v404 = vunpack.c.h.b16 %v205
    %v405 = vunpack.c.l.b16 %v206
    %v406 = vunpack.c.h.b16 %v206
    %v407 = vunpack.c.l.b16 %v207
    %v408 = vunpack.c.h.b16 %v207
    %v409 = vunpack.c.l.b16 %v208
    %v410 = vunpack.c.h.b16 %v208
    %v411 = vunpack.c.l.b16 %v209
    %v412 = vunpack.c.h.b16 %v209
    %v413 = vunpack.c.l.b16 %v210
    %v414 = vunpack.c.h.b16 %v210
    %v415 = vunpack.c.l.b16 %v211
    %v416 = vunpack.c.h.b16 %v211
    %v417 = vunpack.c.l.b16 %v212
    %v418 = vunpack.c.h.b16 %v212
    %v419 = vunpack.c.l.b16 %v213
    %v420 = vunpack.c.h.b16 %v213
    %v421 = vunpack.c.l.b16 %v214
    %v422 = vunpack.c.h.b16 %v214
    %v423 = vunpack.c.l.b16 %v215
    %v424 = vunpack.c.h.b16 %v215
    %v425 = vunpack.c.l.b16 %v216
    %v426 = vunpack.c.h.b16 %v216
    %v427 = vunpack.c.l.b16 %v217
    %v428 = vunpack.c.h.b16 %v217
    %v429 = vunpack.c.l.b16 %v218
    %v430 = vunpack.c.h.b16 %v218
    %v431 = vunpack.c.l.b16 %v219
    %v432 = vunpack.c.h.b16 %v219
    %v433 = vunpack.c.l.b16 %v220
    %v434 = vunpack.c.h.b16 %v220
    %v435 = vpack.c.b16 %v311, %v307
    %v436 = vpack.c.b16 %v312, %v308
    %v437 = vpack.c.b16 %v313, %v309
    %v438 = vpack.c.b16 %v314, %v310
    %v439 = vpack.c.b16 %v319, %v315
    %v440 = vpack.c.b16 %v320, %v316
    %v441 = vpack.c.b16 %v321, %v317
    %v442 = vpack.c.b16 %v322, %v318
    %v443 = vpack.c.b16 %v327, %v323
    %v444 = vpack.c.b16 %v328, %v324
    %v445 = vpack.c.b16 %v329, %v325
    %v446 = vpack.c.b16 %v330, %v326
    %v447 = vpack.c.b16 %v335, %v331
    %v448 = vpack.c.b16 %v336, %v332
    %v449 = vpack.c.b16 %v337, %v333
    %v450 = vpack.c.b16 %v338, %v334
    %v451 = vpack.c.b16 %v343, %v339
    %v452 = vpack.c.b16 %v344, %v340
    %v453 = vpack.c.b16 %v345, %v341
    %v454 = vpack.c.b16 %v346, %v342
    %v455 = vpack.c.b16 %v351, %v347
    %v456 = vpack.c.b16 %v352, %v348
    %v457 = vpack.c.b16 %v353, %v349
    %v458 = vpack.c.b16 %v354, %v350
    %v459 = vpack.c.b16 %v359, %v355
    %v460 = vpack.c.b16 %v360, %v356
    %v461 = vpack.c.b16 %v361, %v357
    %v462 = vpack.c.b16 %v362, %v358
    %v463 = vpack.c.b16 %v367, %v363
    %v464 = vpack.c.b16 %v368, %v364
    %v465 = vpack.c.b16 %v369, %v365
    %v466 = vpack.c.b16 %v370, %v366
    %v467 = vpack.c.b16 %v375, %v371
    %v468 = vpack.c.b16 %v376, %v372
    %v469 = vpack.c.b16 %v377, %v373
    %v470 = vpack.c.b16 %v378, %v374
    %v471 = vpack.c.b16 %v383, %v379
    %v472 = vpack.c.b16 %v384, %v380
    %v473 = vpack.c.b16 %v385, %v381
    %v474 = vpack.c.b16 %v386, %v382
    %v475 = vpack.c.b16 %v391, %v387
    %v476 = vpack.c.b16 %v392, %v388
    %v477 = vpack.c.b16 %v393, %v389
    %v478 = vpack.c.b16 %v394, %v390
    %v479 = vpack.c.b16 %v399, %v395
    %v480 = vpack.c.b16 %v400, %v396
    %v481 = vpack.c.b16 %v401, %v397
    %v482 = vpack.c.b16 %v402, %v398
    %v483 = vpack.c.b16 %v407, %v403
    %v484 = vpack.c.b16 %v408, %v404
    %v485 = vpack.c.b16 %v409, %v405
    %v486 = vpack.c.b16 %v410, %v406
    %v487 = vpack.c.b16 %v415, %v411
    %v488 = vpack.c.b16 %v416, %v412
    %v489 = vpack.c.b16 %v417, %v413
    %v490 = vpack.c.b16 %v418, %v414
    %v491 = vpack.c.b16 %v423, %v419
    %v492 = vpack.c.b16 %v424, %v420
    %v493 = vpack.c.b16 %v425, %v421
    %v494 = vpack.c.b16 %v426, %v422
    %v495 = vpack.c.b16 %v431, %v427
    %v496 = vpack.c.b16 %v432, %v428
    %v497 = vpack.c.b16 %v433, %v429
    %v498 = vpack.c.b16 %v434, %v430
    %563 = vmatprep.subr.bf16.mxu0 %v436
    %564 = vmatpush1.bf16.msra.mxu0 %v435
    %565 = vmatprep.subr.bf16.mxu0 %v440
    %566 = vmatpush1.bf16.msra.mxu0 %v439
    %567 = vmatprep.subr.bf16.mxu0 %v444
    %568 = vmatpush1.bf16.msra.mxu0 %v443
    %569 = vmatprep.subr.bf16.mxu0 %v448
    %570 = vmatpush1.bf16.msra.mxu0 %v447
    %571 = vmatprep.subr.bf16.mxu0 %v452
    %572 = vmatpush1.bf16.msra.mxu0 %v451
    %573 = vmatprep.subr.bf16.mxu0 %v456
    %574 = vmatpush1.bf16.msra.mxu0 %v455
    %575 = vmatprep.subr.bf16.mxu0 %v460
    %576 = vmatpush1.bf16.msra.mxu0 %v459
    %577 = vmatprep.subr.bf16.mxu0 %v464
    %578 = vmatpush1.bf16.msra.mxu0 %v463
    %579 = vmatprep.subr.bf16.mxu0 %v468
    %580 = vmatpush1.bf16.msra.mxu0 %v467
    %581 = vmatprep.subr.bf16.mxu0 %v472
    %582 = vmatpush1.bf16.msra.mxu0 %v471
    %583 = vmatprep.subr.bf16.mxu0 %v476
    %584 = vmatpush1.bf16.msra.mxu0 %v475
    %585 = vmatprep.subr.bf16.mxu0 %v480
    %586 = vmatpush1.bf16.msra.mxu0 %v479
    %587 = vmatprep.subr.bf16.mxu0 %v484
    %588 = vmatpush1.bf16.msra.mxu0 %v483
    %589 = vmatprep.subr.bf16.mxu0 %v488
    %590 = vmatpush1.bf16.msra.mxu0 %v487
    %591 = vmatprep.subr.bf16.mxu0 %v492
    %592 = vmatpush1.bf16.msra.mxu0 %v491
    %593 = vmatprep.subr.bf16.mxu0 %v496
    %594 = vmatpush1.bf16.msra.mxu0 %v495
    %595 = vmatprep.mubr.bf16.mxu0 %v156
    %596 = vmatmul.mubr.bf16.gmra.mrb[0].mxu0 %v155
    %v597 = vpop.f32.mrb[0].mxu0
    %v598 = vadd.f32 %v226, %v597
    %v599 = vpop.f32.mrb[0].mxu0
    %v600 = vadd.f32 %v230, %v599
    %v601 = vpop.f32.mrb[0].mxu0
    %v602 = vpop.f32.mrb[0].mxu0
    %603 = vdwg.mxu0
    %604 = vmatprep.subr.bf16.mxu0 %v438
    %605 = vmatpush1.bf16.msra.mxu0 %v437
    %606 = vmatprep.subr.bf16.mxu0 %v442
    %607 = vmatpush1.bf16.msra.mxu0 %v441
    %608 = vmatprep.subr.bf16.mxu0 %v446
    %609 = vmatpush1.bf16.msra.mxu0 %v445
    %610 = vmatprep.subr.bf16.mxu0 %v450
    %611 = vmatpush1.bf16.msra.mxu0 %v449
    %612 = vmatprep.subr.bf16.mxu0 %v454
    %613 = vmatpush1.bf16.msra.mxu0 %v453
    %614 = vmatprep.subr.bf16.mxu0 %v458
    %615 = vmatpush1.bf16.msra.mxu0 %v457
    %616 = vmatprep.subr.bf16.mxu0 %v462
    %617 = vmatpush1.bf16.msra.mxu0 %v461
    %618 = vmatprep.subr.bf16.mxu0 %v466
    %619 = vmatpush1.bf16.msra.mxu0 %v465
    %620 = vmatprep.subr.bf16.mxu0 %v470
    %621 = vmatpush1.bf16.msra.mxu0 %v469
    %622 = vmatprep.subr.bf16.mxu0 %v474
    %623 = vmatpush1.bf16.msra.mxu0 %v473
    %624 = vmatprep.subr.bf16.mxu0 %v478
    %625 = vmatpush1.bf16.msra.mxu0 %v477
    %626 = vmatprep.subr.bf16.mxu0 %v482
    %627 = vmatpush1.bf16.msra.mxu0 %v481
    %628 = vmatprep.subr.bf16.mxu0 %v486
    %629 = vmatpush1.bf16.msra.mxu0 %v485
    %630 = vmatprep.subr.bf16.mxu0 %v490
    %631 = vmatpush1.bf16.msra.mxu0 %v489
    %632 = vmatprep.subr.bf16.mxu0 %v494
    %633 = vmatpush1.bf16.msra.mxu0 %v493
    %634 = vmatprep.subr.bf16.mxu0 %v498
    %635 = vmatpush1.bf16.msra.mxu0 %v497
    %636 = vmatprep.mubr.bf16.mxu0 %v156
    %637 = vmatmul.mubr.bf16.gmra.mrb[0].mxu0 %v155
    %v638 = vpop.f32.mrb[0].mxu0
    %v639 = vadd.f32 %v234, %v638
    %v640 = vpop.f32.mrb[0].mxu0
    %v641 = vadd.f32 %v238, %v640
    %v642 = vpop.f32.mrb[0].mxu0
    %v643 = vpop.f32.mrb[0].mxu0
    %644 = vdwg.mxu0
    %v645 = vmax.f32 %v598, 0.0
    %v646 = vmax.f32 %v600, 0.0
    %v647 = vmax.f32 %v639, 0.0
    %v648 = vmax.f32 %v641, 0.0
    %v649 = vpack.c.bf16 %v645, %v645
    %v650 = vpack.c.bf16 %v646, %v646
    %v651 = vpack.c.bf16 %v647, %v647
    %v652 = vpack.c.bf16 %v648, %v648
    %v653 = vld [vmem:[#allocation10] sm:$0xff]
    %v654 = vld [vmem:[#allocation10 + $0x8] sm:$0xff]
    %v655 = vld [vmem:[#allocation10 + $0x10] sm:$0xff]
    %v656 = vld [vmem:[#allocation10 + $0x18] sm:$0xff]
    %v657 = vld [vmem:[#allocation10 + $0x20] sm:$0xff]
    %v658 = vld [vmem:[#allocation10 + $0x28] sm:$0xff]
    %v659 = vld [vmem:[#allocation10 + $0x30] sm:$0xff]
    %v660 = vld [vmem:[#allocation10 + $0x38] sm:$0xff]
    %v661 = vld [vmem:[#allocation10 + $0x40] sm:$0xff]
    %v662 = vld [vmem:[#allocation10 + $0x48] sm:$0xff]
    %v663 = vld [vmem:[#allocation10 + $0x50] sm:$0xff]
    %v664 = vld [vmem:[#allocation10 + $0x58] sm:$0xff]
    %v665 = vld [vmem:[#allocation10 + $0x60] sm:$0xff]
    %v666 = vld [vmem:[#allocation10 + $0x68] sm:$0xff]
    %v667 = vld [vmem:[#allocation10 + $0x70] sm:$0xff]
    %v668 = vld [vmem:[#allocation10 + $0x78] sm:$0xff]
    %v669 = vld [vmem:[#allocation10 + $0x80] sm:$0xff]
    %v670 = vld [vmem:[#allocation10 + $0x88] sm:$0xff]
    %v671 = vld [vmem:[#allocation10 + $0x90] sm:$0xff]
    %v672 = vld [vmem:[#allocation10 + $0x98] sm:$0xff]
    %v673 = vld [vmem:[#allocation10 + $0xa0] sm:$0xff]
    %v674 = vld [vmem:[#allocation10 + $0xa8] sm:$0xff]
    %v675 = vld [vmem:[#allocation10 + $0xb0] sm:$0xff]
    %v676 = vld [vmem:[#allocation10 + $0xb8] sm:$0xff]
    %v677 = vld [vmem:[#allocation10 + $0xc0] sm:$0xff]
    %v678 = vld [vmem:[#allocation10 + $0xc8] sm:$0xff]
    %v679 = vld [vmem:[#allocation10 + $0xd0] sm:$0xff]
    %v680 = vld [vmem:[#allocation10 + $0xd8] sm:$0xff]
    %v681 = vld [vmem:[#allocation10 + $0xe0] sm:$0xff]
    %v682 = vld [vmem:[#allocation10 + $0xe8] sm:$0xff]
    %v683 = vld [vmem:[#allocation10 + $0xf0] sm:$0xff]
    %v684 = vld [vmem:[#allocation10 + $0xf8] sm:$0xff]
    %v685 = vld [vmem:[#allocation10 + $0x100] sm:$0xff]
    %v686 = vld [vmem:[#allocation10 + $0x108] sm:$0xff]
    %v687 = vld [vmem:[#allocation10 + $0x110] sm:$0xff]
    %v688 = vld [vmem:[#allocation10 + $0x118] sm:$0xff]
    %v689 = vld [vmem:[#allocation10 + $0x120] sm:$0xff]
    %v690 = vld [vmem:[#allocation10 + $0x128] sm:$0xff]
    %v691 = vld [vmem:[#allocation10 + $0x130] sm:$0xff]
    %v692 = vld [vmem:[#allocation10 + $0x138] sm:$0xff]
    %v693 = vld [vmem:[#allocation10 + $0x140] sm:$0xff]
    %v694 = vld [vmem:[#allocation10 + $0x148] sm:$0xff]
    %v695 = vld [vmem:[#allocation10 + $0x150] sm:$0xff]
    %v696 = vld [vmem:[#allocation10 + $0x158] sm:$0xff]
    %v697 = vld [vmem:[#allocation10 + $0x160] sm:$0xff]
    %v698 = vld [vmem:[#allocation10 + $0x168] sm:$0xff]
    %v699 = vld [vmem:[#allocation10 + $0x170] sm:$0xff]
    %v700 = vld [vmem:[#allocation10 + $0x178] sm:$0xff]
    %v701 = vld [vmem:[#allocation10 + $0x180] sm:$0xff]
    %v702 = vld [vmem:[#allocation10 + $0x188] sm:$0xff]
    %v703 = vld [vmem:[#allocation10 + $0x190] sm:$0xff]
    %v704 = vld [vmem:[#allocation10 + $0x198] sm:$0xff]
    %v705 = vld [vmem:[#allocation10 + $0x1a0] sm:$0xff]
    %v706 = vld [vmem:[#allocation10 + $0x1a8] sm:$0xff]
    %v707 = vld [vmem:[#allocation10 + $0x1b0] sm:$0xff]
    %v708 = vld [vmem:[#allocation10 + $0x1b8] sm:$0xff]
    %v709 = vld [vmem:[#allocation10 + $0x1c0] sm:$0xff]
    %v710 = vld [vmem:[#allocation10 + $0x1c8] sm:$0xff]
    %v711 = vld [vmem:[#allocation10 + $0x1d0] sm:$0xff]
    %v712 = vld [vmem:[#allocation10 + $0x1d8] sm:$0xff]
    %v713 = vld [vmem:[#allocation10 + $0x1e0] sm:$0xff]
    %v714 = vld [vmem:[#allocation10 + $0x1e8] sm:$0xff]
    %v715 = vld [vmem:[#allocation10 + $0x1f0] sm:$0xff]
    %v716 = vld [vmem:[#allocation10 + $0x1f8] sm:$0xff]
    %v717 = vld [vmem:[%s6] sm:$0x3]
    %v719 = vlaneseq
    %v720 = vshrl.u32 %v719, 7
    %v721 = vsub.s32 0, %v720
    %v722 = vrot.slane %v717, %v721
    %v723 = vlaneseq
    %v724 = vshrl.u32 %v723, 7
    %v725 = vsub.s32 1, %v724
    %v726 = vrot.slane %v717, %v725
    %v793 = vunpack.c.l.b16 %v653
    %v794 = vunpack.c.h.b16 %v653
    %v795 = vunpack.c.l.b16 %v654
    %v796 = vunpack.c.h.b16 %v654
    %v797 = vunpack.c.l.b16 %v655
    %v798 = vunpack.c.h.b16 %v655
    %v799 = vunpack.c.l.b16 %v656
    %v800 = vunpack.c.h.b16 %v656
    %v801 = vunpack.c.l.b16 %v657
    %v802 = vunpack.c.h.b16 %v657
    %v803 = vunpack.c.l.b16 %v658
    %v804 = vunpack.c.h.b16 %v658
    %v805 = vunpack.c.l.b16 %v659
    %v806 = vunpack.c.h.b16 %v659
    %v807 = vunpack.c.l.b16 %v660
    %v808 = vunpack.c.h.b16 %v660
    %v809 = vunpack.c.l.b16 %v661
    %v810 = vunpack.c.h.b16 %v661
    %v811 = vunpack.c.l.b16 %v662
    %v812 = vunpack.c.h.b16 %v662
    %v813 = vunpack.c.l.b16 %v663
    %v814 = vunpack.c.h.b16 %v663
    %v815 = vunpack.c.l.b16 %v664
    %v816 = vunpack.c.h.b16 %v664
    %v817 = vunpack.c.l.b16 %v665
    %v818 = vunpack.c.h.b16 %v665
    %v819 = vunpack.c.l.b16 %v666
    %v820 = vunpack.c.h.b16 %v666
    %v821 = vunpack.c.l.b16 %v667
    %v822 = vunpack.c.h.b16 %v667
    %v823 = vunpack.c.l.b16 %v668
    %v824 = vunpack.c.h.b16 %v668
    %v825 = vunpack.c.l.b16 %v669
    %v826 = vunpack.c.h.b16 %v669
    %v827 = vunpack.c.l.b16 %v670
    %v828 = vunpack.c.h.b16 %v670
    %v829 = vunpack.c.l.b16 %v671
    %v830 = vunpack.c.h.b16 %v671
    %v831 = vunpack.c.l.b16 %v672
    %v832 = vunpack.c.h.b16 %v672
    %v833 = vunpack.c.l.b16 %v673
    %v834 = vunpack.c.h.b16 %v673
    %v835 = vunpack.c.l.b16 %v674
    %v836 = vunpack.c.h.b16 %v674
    %v837 = vunpack.c.l.b16 %v675
    %v838 = vunpack.c.h.b16 %v675
    %v839 = vunpack.c.l.b16 %v676
    %v840 = vunpack.c.h.b16 %v676
    %v841 = vunpack.c.l.b16 %v677
    %v842 = vunpack.c.h.b16 %v677
    %v843 = vunpack.c.l.b16 %v678
    %v844 = vunpack.c.h.b16 %v678
    %v845 = vunpack.c.l.b16 %v679
    %v846 = vunpack.c.h.b16 %v679
    %v847 = vunpack.c.l.b16 %v680
    %v848 = vunpack.c.h.b16 %v680
    %v849 = vunpack.c.l.b16 %v681
    %v850 = vunpack.c.h.b16 %v681
    %v851 = vunpack.c.l.b16 %v682
    %v852 = vunpack.c.h.b16 %v682
    %v853 = vunpack.c.l.b16 %v683
    %v854 = vunpack.c.h.b16 %v683
    %v855 = vunpack.c.l.b16 %v684
    %v856 = vunpack.c.h.b16 %v684
    %v857 = vunpack.c.l.b16 %v685
    %v858 = vunpack.c.h.b16 %v685
    %v859 = vunpack.c.l.b16 %v686
    %v860 = vunpack.c.h.b16 %v686
    %v861 = vunpack.c.l.b16 %v687
    %v862 = vunpack.c.h.b16 %v687
    %v863 = vunpack.c.l.b16 %v688
    %v864 = vunpack.c.h.b16 %v688
    %v865 = vunpack.c.l.b16 %v689
    %v866 = vunpack.c.h.b16 %v689
    %v867 = vunpack.c.l.b16 %v690
    %v868 = vunpack.c.h.b16 %v690
    %v869 = vunpack.c.l.b16 %v691
    %v870 = vunpack.c.h.b16 %v691
    %v871 = vunpack.c.l.b16 %v692
    %v872 = vunpack.c.h.b16 %v692
    %v873 = vunpack.c.l.b16 %v693
    %v874 = vunpack.c.h.b16 %v693
    %v875 = vunpack.c.l.b16 %v694
    %v876 = vunpack.c.h.b16 %v694
    %v877 = vunpack.c.l.b16 %v695
    %v878 = vunpack.c.h.b16 %v695
    %v879 = vunpack.c.l.b16 %v696
    %v880 = vunpack.c.h.b16 %v696
    %v881 = vunpack.c.l.b16 %v697
    %v882 = vunpack.c.h.b16 %v697
    %v883 = vunpack.c.l.b16 %v698
    %v884 = vunpack.c.h.b16 %v698
    %v885 = vunpack.c.l.b16 %v699
    %v886 = vunpack.c.h.b16 %v699
    %v887 = vunpack.c.l.b16 %v700
    %v888 = vunpack.c.h.b16 %v700
    %v889 = vunpack.c.l.b16 %v701
    %v890 = vunpack.c.h.b16 %v701
    %v891 = vunpack.c.l.b16 %v702
    %v892 = vunpack.c.h.b16 %v702
    %v893 = vunpack.c.l.b16 %v703
    %v894 = vunpack.c.h.b16 %v703
    %v895 = vunpack.c.l.b16 %v704
    %v896 = vunpack.c.h.b16 %v704
    %v897 = vunpack.c.l.b16 %v705
    %v898 = vunpack.c.h.b16 %v705
    %v899 = vunpack.c.l.b16 %v706
    %v900 = vunpack.c.h.b16 %v706
    %v901 = vunpack.c.l.b16 %v707
    %v902 = vunpack.c.h.b16 %v707
    %v903 = vunpack.c.l.b16 %v708
    %v904 = vunpack.c.h.b16 %v708
    %v905 = vunpack.c.l.b16 %v709
    %v906 = vunpack.c.h.b16 %v709
    %v907 = vunpack.c.l.b16 %v710
    %v908 = vunpack.c.h.b16 %v710
    %v909 = vunpack.c.l.b16 %v711
    %v910 = vunpack.c.h.b16 %v711
    %v911 = vunpack.c.l.b16 %v712
    %v912 = vunpack.c.h.b16 %v712
    %v913 = vunpack.c.l.b16 %v713
    %v914 = vunpack.c.h.b16 %v713
    %v915 = vunpack.c.l.b16 %v714
    %v916 = vunpack.c.h.b16 %v714
    %v917 = vunpack.c.l.b16 %v715
    %v918 = vunpack.c.h.b16 %v715
    %v919 = vunpack.c.l.b16 %v716
    %v920 = vunpack.c.h.b16 %v716
    %v921 = vpack.c.b16 %v795, %v793
    %v922 = vpack.c.b16 %v796, %v794
    %v923 = vpack.c.b16 %v799, %v797
    %v924 = vpack.c.b16 %v800, %v798
    %v925 = vpack.c.b16 %v803, %v801
    %v926 = vpack.c.b16 %v804, %v802
    %v927 = vpack.c.b16 %v807, %v805
    %v928 = vpack.c.b16 %v808, %v806
    %v929 = vpack.c.b16 %v811, %v809
    %v930 = vpack.c.b16 %v812, %v810
    %v931 = vpack.c.b16 %v815, %v813
    %v932 = vpack.c.b16 %v816, %v814
    %v933 = vpack.c.b16 %v819, %v817
    %v934 = vpack.c.b16 %v820, %v818
    %v935 = vpack.c.b16 %v823, %v821
    %v936 = vpack.c.b16 %v824, %v822
    %v937 = vpack.c.b16 %v827, %v825
    %v938 = vpack.c.b16 %v828, %v826
    %v939 = vpack.c.b16 %v831, %v829
    %v940 = vpack.c.b16 %v832, %v830
    %v941 = vpack.c.b16 %v835, %v833
    %v942 = vpack.c.b16 %v836, %v834
    %v943 = vpack.c.b16 %v839, %v837
    %v944 = vpack.c.b16 %v840, %v838
    %v945 = vpack.c.b16 %v843, %v841
    %v946 = vpack.c.b16 %v844, %v842
    %v947 = vpack.c.b16 %v847, %v845
    %v948 = vpack.c.b16 %v848, %v846
    %v949 = vpack.c.b16 %v851, %v849
    %v950 = vpack.c.b16 %v852, %v850
    %v951 = vpack.c.b16 %v855, %v853
    %v952 = vpack.c.b16 %v856, %v854
    %v953 = vpack.c.b16 %v859, %v857
    %v954 = vpack.c.b16 %v860, %v858
    %v955 = vpack.c.b16 %v863, %v861
    %v956 = vpack.c.b16 %v864, %v862
    %v957 = vpack.c.b16 %v867, %v865
    %v958 = vpack.c.b16 %v868, %v866
    %v959 = vpack.c.b16 %v871, %v869
    %v960 = vpack.c.b16 %v872, %v870
    %v961 = vpack.c.b16 %v875, %v873
    %v962 = vpack.c.b16 %v876, %v874
    %v963 = vpack.c.b16 %v879, %v877
    %v964 = vpack.c.b16 %v880, %v878
    %v965 = vpack.c.b16 %v883, %v881
    %v966 = vpack.c.b16 %v884, %v882
    %v967 = vpack.c.b16 %v887, %v885
    %v968 = vpack.c.b16 %v888, %v886
    %v969 = vpack.c.b16 %v891, %v889
    %v970 = vpack.c.b16 %v892, %v890
    %v971 = vpack.c.b16 %v895, %v893
    %v972 = vpack.c.b16 %v896, %v894
    %v973 = vpack.c.b16 %v899, %v897
    %v974 = vpack.c.b16 %v900, %v898
    %v975 = vpack.c.b16 %v903, %v901
    %v976 = vpack.c.b16 %v904, %v902
    %v977 = vpack.c.b16 %v907, %v905
    %v978 = vpack.c.b16 %v908, %v906
    %v979 = vpack.c.b16 %v911, %v909
    %v980 = vpack.c.b16 %v912, %v910
    %v981 = vpack.c.b16 %v915, %v913
    %v982 = vpack.c.b16 %v916, %v914
    %v983 = vpack.c.b16 %v919, %v917
    %v984 = vpack.c.b16 %v920, %v918
    %1049 = vmatprep.subr.bf16.mxu0 %v922
    %1050 = vmatpush1.bf16.msra.mxu0 %v921
    %1051 = vmatprep.subr.bf16.mxu0 %v924
    %1052 = vmatpush1.bf16.msra.mxu0 %v923
    %1053 = vmatprep.subr.bf16.mxu0 %v926
    %1054 = vmatpush1.bf16.msra.mxu0 %v925
    %1055 = vmatprep.subr.bf16.mxu0 %v928
    %1056 = vmatpush1.bf16.msra.mxu0 %v927
    %1057 = vmatprep.subr.bf16.mxu0 %v930
    %1058 = vmatpush1.bf16.msra.mxu0 %v929
    %1059 = vmatprep.subr.bf16.mxu0 %v932
    %1060 = vmatpush1.bf16.msra.mxu0 %v931
    %1061 = vmatprep.subr.bf16.mxu0 %v934
    %1062 = vmatpush1.bf16.msra.mxu0 %v933
    %1063 = vmatprep.subr.bf16.mxu0 %v936
    %1064 = vmatpush1.bf16.msra.mxu0 %v935
    %1065 = vmatprep.subr.bf16.mxu0 %v938
    %1066 = vmatpush1.bf16.msra.mxu0 %v937
    %1067 = vmatprep.subr.bf16.mxu0 %v940
    %1068 = vmatpush1.bf16.msra.mxu0 %v939
    %1069 = vmatprep.subr.bf16.mxu0 %v942
    %1070 = vmatpush1.bf16.msra.mxu0 %v941
    %1071 = vmatprep.subr.bf16.mxu0 %v944
    %1072 = vmatpush1.bf16.msra.mxu0 %v943
    %1073 = vmatprep.subr.bf16.mxu0 %v946
    %1074 = vmatpush1.bf16.msra.mxu0 %v945
    %1075 = vmatprep.subr.bf16.mxu0 %v948
    %1076 = vmatpush1.bf16.msra.mxu0 %v947
    %1077 = vmatprep.subr.bf16.mxu0 %v950
    %1078 = vmatpush1.bf16.msra.mxu0 %v949
    %1079 = vmatprep.subr.bf16.mxu0 %v952
    %1080 = vmatpush1.bf16.msra.mxu0 %v951
    %1081 = vmatprep.mubr.bf16.mxu0 %v650
    %1082 = vmatmul.mubr.bf16.gmra.mrb[0].mxu0 %v649
    %v1083 = vpop.f32.mrb[0].mxu0
    %v1084 = vadd.f32 %v722, %v1083
    %v1085 = vpop.f32.mrb[0].mxu0
    %v1086 = vadd.f32 %v726, %v1085
    %v1087 = vpop.f32.mrb[0].mxu0
    %v1088 = vpop.f32.mrb[0].mxu0
    %1089 = vdwg.mxu0
    %1090 = vmatprep.subr.bf16.mxu0 %v954
    %1091 = vmatpush1.bf16.msra.mxu0 %v953
    %1092 = vmatprep.subr.bf16.mxu0 %v956
    %1093 = vmatpush1.bf16.msra.mxu0 %v955
    %1094 = vmatprep.subr.bf16.mxu0 %v958
    %1095 = vmatpush1.bf16.msra.mxu0 %v957
    %1096 = vmatprep.subr.bf16.mxu0 %v960
    %1097 = vmatpush1.bf16.msra.mxu0 %v959
    %1098 = vmatprep.subr.bf16.mxu0 %v962
    %1099 = vmatpush1.bf16.msra.mxu0 %v961
    %1100 = vmatprep.subr.bf16.mxu0 %v964
    %1101 = vmatpush1.bf16.msra.mxu0 %v963
    %1102 = vmatprep.subr.bf16.mxu0 %v966
    %1103 = vmatpush1.bf16.msra.mxu0 %v965
    %1104 = vmatprep.subr.bf16.mxu0 %v968
    %1105 = vmatpush1.bf16.msra.mxu0 %v967
    %1106 = vmatprep.subr.bf16.mxu0 %v970
    %1107 = vmatpush1.bf16.msra.mxu0 %v969
    %1108 = vmatprep.subr.bf16.mxu0 %v972
    %1109 = vmatpush1.bf16.msra.mxu0 %v971
    %1110 = vmatprep.subr.bf16.mxu0 %v974
    %1111 = vmatpush1.bf16.msra.mxu0 %v973
    %1112 = vmatprep.subr.bf16.mxu0 %v976
    %1113 = vmatpush1.bf16.msra.mxu0 %v975
    %1114 = vmatprep.subr.bf16.mxu0 %v978
    %1115 = vmatpush1.bf16.msra.mxu0 %v977
    %1116 = vmatprep.subr.bf16.mxu0 %v980
    %1117 = vmatpush1.bf16.msra.mxu0 %v979
    %1118 = vmatprep.subr.bf16.mxu0 %v982
    %1119 = vmatpush1.bf16.msra.mxu0 %v981
    %1120 = vmatprep.subr.bf16.mxu0 %v984
    %1121 = vmatpush1.bf16.msra.mxu0 %v983
    %1122 = vmatprep.mubr.bf16.mxu0 %v652
    %1123 = vmatmul.mubr.bf16.gmra.mrb[0].mxu0 %v651
    %v1124 = vpop.f32.mrb[0].mxu0
    %v1125 = vadd.f32 %v1084, %v1124
    %v1126 = vpop.f32.mrb[0].mxu0
    %v1127 = vadd.f32 %v1086, %v1126
    %v1128 = vpop.f32.mrb[0].mxu0
    %v1129 = vpop.f32.mrb[0].mxu0
    %1130 = vdwg.mxu0
    %v1131 = vmul.f32 %v1127, 1.442695
    %v1132 = vpow.pop %v1131
    %v1133 = vld [vmem:[#allocation5] sm:$0xff]
    %v1134 = vmul.f32 %v1132, %v1133
    %v1135 = vadd.f32 %v1125, %v1134
    %1136 = vst [vmem:[#allocation16] sm:$0xff] %v1135
    %v1137 = vpack.c.bf16 %v1135, %v1135
    %v1138 = vld [vmem:[#allocation11] sm:$0xff]
    %v1139 = vld [vmem:[#allocation11 + $0x8] sm:$0xff]
    %v1140 = vld [vmem:[#allocation11 + $0x10] sm:$0xf]
    %v1141 = vld [vmem:[#allocation11 + $0x14] sm:$0xff]
    %v1142 = vld [vmem:[#allocation11 + $0x1c] sm:$0xff]
    %v1143 = vld [vmem:[#allocation11 + $0x24] sm:$0xf]
    %v1144 = vld [vmem:[#allocation11 + $0x28] sm:$0xff]
    %v1145 = vld [vmem:[#allocation11 + $0x30] sm:$0xff]
    %v1146 = vld [vmem:[#allocation11 + $0x38] sm:$0xf]
    %v1147 = vld [vmem:[#allocation11 + $0x3c] sm:$0xff]
    %v1148 = vld [vmem:[#allocation11 + $0x44] sm:$0xff]
    %v1149 = vld [vmem:[#allocation11 + $0x4c] sm:$0xf]
    %v1150 = vld [vmem:[#allocation11 + $0x50] sm:$0xff]
    %v1151 = vld [vmem:[#allocation11 + $0x58] sm:$0xff]
    %v1152 = vld [vmem:[#allocation11 + $0x60] sm:$0xf]
    %v1153 = vld [vmem:[#allocation11 + $0x64] sm:$0xff]
    %v1154 = vld [vmem:[#allocation11 + $0x6c] sm:$0xff]
    %v1155 = vld [vmem:[#allocation11 + $0x74] sm:$0xf]
    %v1156 = vld [vmem:[#allocation11 + $0x78] sm:$0xff]
    %v1157 = vld [vmem:[#allocation11 + $0x80] sm:$0xff]
    %v1158 = vld [vmem:[#allocation11 + $0x88] sm:$0xf]
    %v1159 = vld [vmem:[#allocation11 + $0x8c] sm:$0xff]
    %v1160 = vld [vmem:[#allocation11 + $0x94] sm:$0xff]
    %v1161 = vld [vmem:[#allocation11 + $0x9c] sm:$0xf]
    %v1162 = vld [vmem:[#allocation11 + $0xa0] sm:$0xff]
    %v1163 = vld [vmem:[#allocation11 + $0xa8] sm:$0xff]
    %v1164 = vld [vmem:[#allocation11 + $0xb0] sm:$0xf]
    %v1165 = vld [vmem:[#allocation11 + $0xb4] sm:$0xff]
    %v1166 = vld [vmem:[#allocation11 + $0xbc] sm:$0xff]
    %v1167 = vld [vmem:[#allocation11 + $0xc4] sm:$0xf]
    %v1168 = vld [vmem:[#allocation11 + $0xc8] sm:$0xff]
    %v1169 = vld [vmem:[#allocation11 + $0xd0] sm:$0xff]
    %v1170 = vld [vmem:[#allocation11 + $0xd8] sm:$0xf]
    %v1171 = vld [vmem:[#allocation11 + $0xdc] sm:$0xff]
    %v1172 = vld [vmem:[#allocation11 + $0xe4] sm:$0xff]
    %v1173 = vld [vmem:[#allocation11 + $0xec] sm:$0xf]
    %v1174 = vld [vmem:[#allocation11 + $0xf0] sm:$0xff]
    %v1175 = vld [vmem:[#allocation11 + $0xf8] sm:$0xff]
    %v1176 = vld [vmem:[#allocation11 + $0x100] sm:$0xf]
    %v1177 = vld [vmem:[#allocation11 + $0x104] sm:$0xff]
    %v1178 = vld [vmem:[#allocation11 + $0x10c] sm:$0xff]
    %v1179 = vld [vmem:[#allocation11 + $0x114] sm:$0xf]
    %v1180 = vld [vmem:[#allocation11 + $0x118] sm:$0xff]
    %v1181 = vld [vmem:[#allocation11 + $0x120] sm:$0xff]
    %v1182 = vld [vmem:[#allocation11 + $0x128] sm:$0xf]
    %v1183 = vld [vmem:[#allocation11 + $0x12c] sm:$0xff]
    %v1184 = vld [vmem:[#allocation11 + $0x134] sm:$0xff]
    %v1185 = vld [vmem:[#allocation11 + $0x13c] sm:$0xf]
    %v1186 = vld [vmem:[%s8] sm:$0x1f]
    %v1188 = vlaneseq
    %v1189 = vshrl.u32 %v1188, 7
    %v1190 = vsub.s32 0, %v1189
    %v1191 = vrot.slane %v1186, %v1190
    %v1192 = vlaneseq
    %v1193 = vshrl.u32 %v1192, 7
    %v1194 = vsub.s32 1, %v1193
    %v1195 = vrot.slane %v1186, %v1194
    %v1196 = vlaneseq
    %v1197 = vshrl.u32 %v1196, 7
    %v1198 = vsub.s32 2, %v1197
    %v1199 = vrot.slane %v1186, %v1198
    %v1200 = vlaneseq
    %v1201 = vshrl.u32 %v1200, 7
    %v1202 = vsub.s32 3, %v1201
    %v1203 = vrot.slane %v1186, %v1202
    %v1204 = vlaneseq
    %v1205 = vshrl.u32 %v1204, 7
    %v1206 = vsub.s32 4, %v1205
    %v1207 = vrot.slane %v1186, %v1206
    %v1261 = vunpack.c.l.b16 %v1138
    %v1262 = vunpack.c.h.b16 %v1138
    %v1263 = vunpack.c.l.b16 %v1139
    %v1264 = vunpack.c.h.b16 %v1139
    %v1265 = vunpack.c.l.b16 %v1140
    %v1266 = vunpack.c.l.b16 %v1141
    %v1267 = vunpack.c.h.b16 %v1141
    %v1268 = vunpack.c.l.b16 %v1142
    %v1269 = vunpack.c.h.b16 %v1142
    %v1270 = vunpack.c.l.b16 %v1143
    %v1271 = vunpack.c.l.b16 %v1144
    %v1272 = vunpack.c.h.b16 %v1144
    %v1273 = vunpack.c.l.b16 %v1145
    %v1274 = vunpack.c.h.b16 %v1145
    %v1275 = vunpack.c.l.b16 %v1146
    %v1276 = vunpack.c.l.b16 %v1147
    %v1277 = vunpack.c.h.b16 %v1147
    %v1278 = vunpack.c.l.b16 %v1148
    %v1279 = vunpack.c.h.b16 %v1148
    %v1280 = vunpack.c.l.b16 %v1149
    %v1281 = vunpack.c.l.b16 %v1150
    %v1282 = vunpack.c.h.b16 %v1150
    %v1283 = vunpack.c.l.b16 %v1151
    %v1284 = vunpack.c.h.b16 %v1151
    %v1285 = vunpack.c.l.b16 %v1152
    %v1286 = vunpack.c.l.b16 %v1153
    %v1287 = vunpack.c.h.b16 %v1153
    %v1288 = vunpack.c.l.b16 %v1154
    %v1289 = vunpack.c.h.b16 %v1154
    %v1290 = vunpack.c.l.b16 %v1155
    %v1291 = vunpack.c.l.b16 %v1156
    %v1292 = vunpack.c.h.b16 %v1156
    %v1293 = vunpack.c.l.b16 %v1157
    %v1294 = vunpack.c.h.b16 %v1157
    %v1295 = vunpack.c.l.b16 %v1158
    %v1296 = vunpack.c.l.b16 %v1159
    %v1297 = vunpack.c.h.b16 %v1159
    %v1298 = vunpack.c.l.b16 %v1160
    %v1299 = vunpack.c.h.b16 %v1160
    %v1300 = vunpack.c.l.b16 %v1161
    %v1301 = vunpack.c.l.b16 %v1162
    %v1302 = vunpack.c.h.b16 %v1162
    %v1303 = vunpack.c.l.b16 %v1163
    %v1304 = vunpack.c.h.b16 %v1163
    %v1305 = vunpack.c.l.b16 %v1164
    %v1306 = vunpack.c.l.b16 %v1165
    %v1307 = vunpack.c.h.b16 %v1165
    %v1308 = vunpack.c.l.b16 %v1166
    %v1309 = vunpack.c.h.b16 %v1166
    %v1310 = vunpack.c.l.b16 %v1167
    %v1311 = vunpack.c.l.b16 %v1168
    %v1312 = vunpack.c.h.b16 %v1168
    %v1313 = vunpack.c.l.b16 %v1169
    %v1314 = vunpack.c.h.b16 %v1169
    %v1315 = vunpack.c.l.b16 %v1170
    %v1316 = vunpack.c.l.b16 %v1171
    %v1317 = vunpack.c.h.b16 %v1171
    %v1318 = vunpack.c.l.b16 %v1172
    %v1319 = vunpack.c.h.b16 %v1172
    %v1320 = vunpack.c.l.b16 %v1173
    %v1321 = vunpack.c.l.b16 %v1174
    %v1322 = vunpack.c.h.b16 %v1174
    %v1323 = vunpack.c.l.b16 %v1175
    %v1324 = vunpack.c.h.b16 %v1175
    %v1325 = vunpack.c.l.b16 %v1176
    %v1326 = vunpack.c.l.b16 %v1177
    %v1327 = vunpack.c.h.b16 %v1177
    %v1328 = vunpack.c.l.b16 %v1178
    %v1329 = vunpack.c.h.b16 %v1178
    %v1330 = vunpack.c.l.b16 %v1179
    %v1331 = vunpack.c.l.b16 %v1180
    %v1332 = vunpack.c.h.b16 %v1180
    %v1333 = vunpack.c.l.b16 %v1181
    %v1334 = vunpack.c.h.b16 %v1181
    %v1335 = vunpack.c.l.b16 %v1182
    %v1336 = vunpack.c.l.b16 %v1183
    %v1337 = vunpack.c.h.b16 %v1183
    %v1338 = vunpack.c.l.b16 %v1184
    %v1339 = vunpack.c.h.b16 %v1184
    %v1340 = vunpack.c.l.b16 %v1185
    %v1341 = vpack.c.b16 %v1266, %v1261
    %v1342 = vpack.c.b16 %v1267, %v1262
    %v1343 = vpack.c.b16 %v1268, %v1263
    %v1344 = vpack.c.b16 %v1269, %v1264
    %v1345 = vpack.c.b16 %v1270, %v1265
    %v1346 = vpack.c.b16 %v1276, %v1271
    %v1347 = vpack.c.b16 %v1277, %v1272
    %v1348 = vpack.c.b16 %v1278, %v1273
    %v1349 = vpack.c.b16 %v1279, %v1274
    %v1350 = vpack.c.b16 %v1280, %v1275
    %v1351 = vpack.c.b16 %v1286, %v1281
    %v1352 = vpack.c.b16 %v1287, %v1282
    %v1353 = vpack.c.b16 %v1288, %v1283
    %v1354 = vpack.c.b16 %v1289, %v1284
    %v1355 = vpack.c.b16 %v1290, %v1285
    %v1356 = vpack.c.b16 %v1296, %v1291
    %v1357 = vpack.c.b16 %v1297, %v1292
    %v1358 = vpack.c.b16 %v1298, %v1293
    %v1359 = vpack.c.b16 %v1299, %v1294
    %v1360 = vpack.c.b16 %v1300, %v1295
    %v1361 = vpack.c.b16 %v1306, %v1301
    %v1362 = vpack.c.b16 %v1307, %v1302
    %v1363 = vpack.c.b16 %v1308, %v1303
    %v1364 = vpack.c.b16 %v1309, %v1304
    %v1365 = vpack.c.b16 %v1310, %v1305
    %v1366 = vpack.c.b16 %v1316, %v1311
    %v1367 = vpack.c.b16 %v1317, %v1312
    %v1368 = vpack.c.b16 %v1318, %v1313
    %v1369 = vpack.c.b16 %v1319, %v1314
    %v1370 = vpack.c.b16 %v1320, %v1315
    %v1371 = vpack.c.b16 %v1326, %v1321
    %v1372 = vpack.c.b16 %v1327, %v1322
    %v1373 = vpack.c.b16 %v1328, %v1323
    %v1374 = vpack.c.b16 %v1329, %v1324
    %v1375 = vpack.c.b16 %v1330, %v1325
    %v1376 = vpack.c.b16 %v1336, %v1331
    %v1377 = vpack.c.b16 %v1337, %v1332
    %v1378 = vpack.c.b16 %v1338, %v1333
    %v1379 = vpack.c.b16 %v1339, %v1334
    %v1380 = vpack.c.b16 %v1340, %v1335
    %1421 = vmatprep.subr.bf16.mxu0 %v1342
    %1422 = vmatpush1.bf16.msra.mxu0 %v1341
    %1423 = vmatprep.subr.bf16.mxu0 %v1347
    %1424 = vmatpush1.bf16.msra.mxu0 %v1346
    %1425 = vmatprep.subr.bf16.mxu0 %v1352
    %1426 = vmatpush1.bf16.msra.mxu0 %v1351
    %1427 = vmatprep.subr.bf16.mxu0 %v1357
    %1428 = vmatpush1.bf16.msra.mxu0 %v1356
    %1429 = vmatprep.subr.bf16.mxu0 %v1362
    %1430 = vmatpush1.bf16.msra.mxu0 %v1361
    %1431 = vmatprep.subr.bf16.mxu0 %v1367
    %1432 = vmatpush1.bf16.msra.mxu0 %v1366
    %1433 = vmatprep.subr.bf16.mxu0 %v1372
    %1434 = vmatpush1.bf16.msra.mxu0 %v1371
    %1435 = vmatprep.subr.bf16.mxu0 %v1377
    %1436 = vmatpush1.bf16.msra.mxu0 %v1376
    %1437 = vmatprep.subr.bf16.mxu0 0
    %1438 = vmatpush1.bf16.msra.mxu0 0
    %1439 = vmatprep.subr.bf16.mxu0 0
    %1440 = vmatpush1.bf16.msra.mxu0 0
    %1441 = vmatprep.subr.bf16.mxu0 0
    %1442 = vmatpush1.bf16.msra.mxu0 0
    %1443 = vmatprep.subr.bf16.mxu0 0
    %1444 = vmatpush1.bf16.msra.mxu0 0
    %1445 = vmatprep.subr.bf16.mxu0 0
    %1446 = vmatpush1.bf16.msra.mxu0 0
    %1447 = vmatprep.subr.bf16.mxu0 0
    %1448 = vmatpush1.bf16.msra.mxu0 0
    %1449 = vmatprep.subr.bf16.mxu0 0
    %1450 = vmatpush1.bf16.msra.mxu0 0
    %1451 = vmatprep.subr.bf16.mxu0 0
    %1452 = vmatpush1.bf16.msra.mxu0 0
    %1453 = vmatprep.mubr.bf16.mxu0 0
    %1454 = vmatmul.mubr.bf16.gmra.mrb[0].mxu0 %v1137
    %v1455 = vpop.f32.mrb[0].mxu0
    %v1456 = vadd.f32 %v1191, %v1455
    %v1457 = vpop.f32.mrb[0].mxu0
    %v1458 = vadd.f32 %v1195, %v1457
    %v1459 = vpop.f32.mrb[0].mxu0
    %v1460 = vpop.f32.mrb[0].mxu0
    %1461 = vdwg.mxu0
    %1462 = vmatprep.subr.bf16.mxu0 %v1344
    %1463 = vmatpush1.bf16.msra.mxu0 %v1343
    %1464 = vmatprep.subr.bf16.mxu0 %v1349
    %1465 = vmatpush1.bf16.msra.mxu0 %v1348
    %1466 = vmatprep.subr.bf16.mxu0 %v1354
    %1467 = vmatpush1.bf16.msra.mxu0 %v1353
    %1468 = vmatprep.subr.bf16.mxu0 %v1359
    %1469 = vmatpush1.bf16.msra.mxu0 %v1358
    %1470 = vmatprep.subr.bf16.mxu0 %v1364
    %1471 = vmatpush1.bf16.msra.mxu0 %v1363
    %1472 = vmatprep.subr.bf16.mxu0 %v1369
    %1473 = vmatpush1.bf16.msra.mxu0 %v1368
    %1474 = vmatprep.subr.bf16.mxu0 %v1374
    %1475 = vmatpush1.bf16.msra.mxu0 %v1373
    %1476 = vmatprep.subr.bf16.mxu0 %v1379
    %1477 = vmatpush1.bf16.msra.mxu0 %v1378
    %1478 = vmatprep.subr.bf16.mxu0 0
    %1479 = vmatpush1.bf16.msra.mxu0 0
    %1480 = vmatprep.subr.bf16.mxu0 0
    %1481 = vmatpush1.bf16.msra.mxu0 0
    %1482 = vmatprep.subr.bf16.mxu0 0
    %1483 = vmatpush1.bf16.msra.mxu0 0
    %1484 = vmatprep.subr.bf16.mxu0 0
    %1485 = vmatpush1.bf16.msra.mxu0 0
    %1486 = vmatprep.subr.bf16.mxu0 0
    %1487 = vmatpush1.bf16.msra.mxu0 0
    %1488 = vmatprep.subr.bf16.mxu0 0
    %1489 = vmatpush1.bf16.msra.mxu0 0
    %1490 = vmatprep.subr.bf16.mxu0 0
    %1491 = vmatpush1.bf16.msra.mxu0 0
    %1492 = vmatprep.subr.bf16.mxu0 0
    %1493 = vmatpush1.bf16.msra.mxu0 0
    %1494 = vmatprep.mubr.bf16.mxu0 0
    %1495 = vmatmul.mubr.bf16.gmra.mrb[0].mxu0 %v1137
    %v1496 = vpop.f32.mrb[0].mxu0
    %v1497 = vadd.f32 %v1199, %v1496
    %v1498 = vpop.f32.mrb[0].mxu0
    %v1499 = vadd.f32 %v1203, %v1498
    %v1500 = vpop.f32.mrb[0].mxu0
    %v1501 = vpop.f32.mrb[0].mxu0
    %1502 = vdwg.mxu0
    %1503 = vmatprep.subr.bf16.mxu0 0
    %1504 = vmatpush1.bf16.msra.mxu0 %v1345
    %1505 = vmatprep.subr.bf16.mxu0 0
    %1506 = vmatpush1.bf16.msra.mxu0 %v1350
    %1507 = vmatprep.subr.bf16.mxu0 0
    %1508 = vmatpush1.bf16.msra.mxu0 %v1355
    %1509 = vmatprep.subr.bf16.mxu0 0
    %1510 = vmatpush1.bf16.msra.mxu0 %v1360
    %1511 = vmatprep.subr.bf16.mxu0 0
    %1512 = vmatpush1.bf16.msra.mxu0 %v1365
    %1513 = vmatprep.subr.bf16.mxu0 0
    %1514 = vmatpush1.bf16.msra.mxu0 %v1370
    %1515 = vmatprep.subr.bf16.mxu0 0
    %1516 = vmatpush1.bf16.msra.mxu0 %v1375
    %1517 = vmatprep.subr.bf16.mxu0 0
    %1518 = vmatpush1.bf16.msra.mxu0 %v1380
    %1519 = vmatprep.subr.bf16.mxu0 0
    %1520 = vmatpush1.bf16.msra.mxu0 0
    %1521 = vmatprep.subr.bf16.mxu0 0
    %1522 = vmatpush1.bf16.msra.mxu0 0
    %1523 = vmatprep.subr.bf16.mxu0 0
    %1524 = vmatpush1.bf16.msra.mxu0 0
    %1525 = vmatprep.subr.bf16.mxu0 0
    %1526 = vmatpush1.bf16.msra.mxu0 0
    %1527 = vmatprep.subr.bf16.mxu0 0
    %1528 = vmatpush1.bf16.msra.mxu0 0
    %1529 = vmatprep.subr.bf16.mxu0 0
    %1530 = vmatpush1.bf16.msra.mxu0 0
    %1531 = vmatprep.subr.bf16.mxu0 0
    %1532 = vmatpush1.bf16.msra.mxu0 0
    %1533 = vmatprep.subr.bf16.mxu0 0
    %1534 = vmatpush1.bf16.msra.mxu0 0
    %1535 = vmatprep.mubr.bf16.mxu0 0
    %1536 = vmatmul.mubr.bf16.gmra.mrb[0].mxu0 %v1137
    %v1537 = vpop.f32.mrb[0].mxu0
    %v1538 = vadd.f32 %v1207, %v1537
    %v1539 = vpop.f32.mrb[0].mxu0
    %v1540 = vpop.f32.mrb[0].mxu0
    %v1541 = vpop.f32.mrb[0].mxu0
    %1542 = vdwg.mxu0
    %v1543 = vmax.f32 %v1456, 0.0
    %v1544 = vmax.f32 %v1458, 0.0
    %v1545 = vmax.f32 %v1497, 0.0
    %v1546 = vmax.f32 %v1499, 0.0
    %v1547 = vmax.f32 %v1538, 0.0
    %v1548 = vpack.c.bf16 %v1543, %v1543
    %v1549 = vpack.c.bf16 %v1544, %v1544
    %v1550 = vpack.c.bf16 %v1545, %v1545
    %v1551 = vpack.c.bf16 %v1546, %v1546
    %v1552 = vld [vmem:[#allocation7] sm:$0xff]
    %v1553 = vmul.f32 %v1547, %v1552
    %v1554 = vpack.c.bf16 %v1553, %v1553
    %v1555 = vld [vmem:[#allocation13] sm:$0xff]
    %v1556 = vld [vmem:[#allocation13 + $0x8] sm:$0xff]
    %v1557 = vld [vmem:[#allocation13 + $0x10] sm:$0xff]
    %v1558 = vld [vmem:[#allocation13 + $0x18] sm:$0xff]
    %v1559 = vld [vmem:[#allocation13 + $0x20] sm:$0xff]
    %v1560 = vld [vmem:[#allocation13 + $0x28] sm:$0xff]
    %v1561 = vld [vmem:[#allocation13 + $0x30] sm:$0xff]
    %v1562 = vld [vmem:[#allocation13 + $0x38] sm:$0xff]
    %v1563 = vld [vmem:[#allocation13 + $0x40] sm:$0xff]
    %v1564 = vld [vmem:[#allocation13 + $0x48] sm:$0xff]
    %v1565 = vld [vmem:[#allocation13 + $0x50] sm:$0xff]
    %v1566 = vld [vmem:[#allocation13 + $0x58] sm:$0xff]
    %v1567 = vld [vmem:[#allocation13 + $0x60] sm:$0xff]
    %v1568 = vld [vmem:[#allocation13 + $0x68] sm:$0xff]
    %v1569 = vld [vmem:[#allocation13 + $0x70] sm:$0xff]
    %v1570 = vld [vmem:[#allocation13 + $0x78] sm:$0xff]
    %v1571 = vld [vmem:[#allocation13 + $0x80] sm:$0xff]
    %v1572 = vld [vmem:[#allocation13 + $0x88] sm:$0xff]
    %v1573 = vld [vmem:[#allocation13 + $0x90] sm:$0xff]
    %v1574 = vld [vmem:[#allocation13 + $0x98] sm:$0xff]
    %v1575 = vld [vmem:[#allocation13 + $0xa0] sm:$0xff]
    %v1576 = vld [vmem:[#allocation13 + $0xa8] sm:$0xff]
    %v1577 = vld [vmem:[#allocation13 + $0xb0] sm:$0xff]
    %v1578 = vld [vmem:[#allocation13 + $0xb8] sm:$0xff]
    %v1579 = vld [vmem:[#allocation13 + $0xc0] sm:$0xff]
    %v1580 = vld [vmem:[#allocation13 + $0xc8] sm:$0xff]
    %v1581 = vld [vmem:[#allocation13 + $0xd0] sm:$0xff]
    %v1582 = vld [vmem:[#allocation13 + $0xd8] sm:$0xff]
    %v1583 = vld [vmem:[#allocation13 + $0xe0] sm:$0xff]
    %v1584 = vld [vmem:[#allocation13 + $0xe8] sm:$0xff]
    %v1585 = vld [vmem:[#allocation13 + $0xf0] sm:$0xff]
    %v1586 = vld [vmem:[#allocation13 + $0xf8] sm:$0xff]
    %v1587 = vld [vmem:[#allocation13 + $0x100] sm:$0xff]
    %v1588 = vld [vmem:[#allocation13 + $0x108] sm:$0xff]
    %v1589 = vld [vmem:[#allocation13 + $0x110] sm:$0xff]
    %v1590 = vld [vmem:[#allocation13 + $0x118] sm:$0xff]
    %v1591 = vld [vmem:[#allocation13 + $0x120] sm:$0xff]
    %v1592 = vld [vmem:[#allocation13 + $0x128] sm:$0xff]
    %v1593 = vld [vmem:[#allocation13 + $0x130] sm:$0xff]
    %v1594 = vld [vmem:[#allocation13 + $0x138] sm:$0xff]
    %v1595 = vld [vmem:[#allocation13 + $0x140] sm:$0xff]
    %v1596 = vld [vmem:[#allocation13 + $0x148] sm:$0xff]
    %v1597 = vld [vmem:[#allocation13 + $0x150] sm:$0xff]
    %v1598 = vld [vmem:[#allocation13 + $0x158] sm:$0xff]
    %v1599 = vld [vmem:[#allocation13 + $0x160] sm:$0xff]
    %v1600 = vld [vmem:[#allocation13 + $0x168] sm:$0xff]
    %v1601 = vld [vmem:[#allocation13 + $0x170] sm:$0xff]
    %v1602 = vld [vmem:[#allocation13 + $0x178] sm:$0xff]
    %v1603 = vld [vmem:[#allocation13 + $0x180] sm:$0xff]
    %v1604 = vld [vmem:[#allocation13 + $0x188] sm:$0xff]
    %v1605 = vld [vmem:[#allocation13 + $0x190] sm:$0xff]
    %v1606 = vld [vmem:[#allocation13 + $0x198] sm:$0xff]
    %v1607 = vld [vmem:[#allocation13 + $0x1a0] sm:$0xff]
    %v1608 = vld [vmem:[#allocation13 + $0x1a8] sm:$0xff]
    %v1609 = vld [vmem:[#allocation13 + $0x1b0] sm:$0xff]
    %v1610 = vld [vmem:[#allocation13 + $0x1b8] sm:$0xff]
    %v1611 = vld [vmem:[#allocation13 + $0x1c0] sm:$0xff]
    %v1612 = vld [vmem:[#allocation13 + $0x1c8] sm:$0xff]
    %v1613 = vld [vmem:[#allocation13 + $0x1d0] sm:$0xff]
    %v1614 = vld [vmem:[#allocation13 + $0x1d8] sm:$0xff]
    %v1615 = vld [vmem:[#allocation13 + $0x1e0] sm:$0xff]
    %v1616 = vld [vmem:[#allocation13 + $0x1e8] sm:$0xff]
    %v1617 = vld [vmem:[#allocation13 + $0x1f0] sm:$0xff]
    %v1618 = vld [vmem:[#allocation13 + $0x1f8] sm:$0xff]
    %v1619 = vld [vmem:[%s10] sm:$0x3]
    %v1621 = vlaneseq
    %v1622 = vshrl.u32 %v1621, 7
    %v1623 = vsub.s32 0, %v1622
    %v1624 = vrot.slane %v1619, %v1623
    %v1625 = vlaneseq
    %v1626 = vshrl.u32 %v1625, 7
    %v1627 = vsub.s32 1, %v1626
    %v1628 = vrot.slane %v1619, %v1627
    %v1695 = vunpack.c.l.b16 %v1555
    %v1696 = vunpack.c.h.b16 %v1555
    %v1697 = vunpack.c.l.b16 %v1556
    %v1698 = vunpack.c.h.b16 %v1556
    %v1699 = vunpack.c.l.b16 %v1557
    %v1700 = vunpack.c.h.b16 %v1557
    %v1701 = vunpack.c.l.b16 %v1558
    %v1702 = vunpack.c.h.b16 %v1558
    %v1703 = vunpack.c.l.b16 %v1559
    %v1704 = vunpack.c.h.b16 %v1559
    %v1705 = vunpack.c.l.b16 %v1560
    %v1706 = vunpack.c.h.b16 %v1560
    %v1707 = vunpack.c.l.b16 %v1561
    %v1708 = vunpack.c.h.b16 %v1561
    %v1709 = vunpack.c.l.b16 %v1562
    %v1710 = vunpack.c.h.b16 %v1562
    %v1711 = vunpack.c.l.b16 %v1563
    %v1712 = vunpack.c.h.b16 %v1563
    %v1713 = vunpack.c.l.b16 %v1564
    %v1714 = vunpack.c.h.b16 %v1564
    %v1715 = vunpack.c.l.b16 %v1565
    %v1716 = vunpack.c.h.b16 %v1565
    %v1717 = vunpack.c.l.b16 %v1566
    %v1718 = vunpack.c.h.b16 %v1566
    %v1719 = vunpack.c.l.b16 %v1567
    %v1720 = vunpack.c.h.b16 %v1567
    %v1721 = vunpack.c.l.b16 %v1568
    %v1722 = vunpack.c.h.b16 %v1568
    %v1723 = vunpack.c.l.b16 %v1569
    %v1724 = vunpack.c.h.b16 %v1569
    %v1725 = vunpack.c.l.b16 %v1570
    %v1726 = vunpack.c.h.b16 %v1570
    %v1727 = vunpack.c.l.b16 %v1571
    %v1728 = vunpack.c.h.b16 %v1571
    %v1729 = vunpack.c.l.b16 %v1572
    %v1730 = vunpack.c.h.b16 %v1572
    %v1731 = vunpack.c.l.b16 %v1573
    %v1732 = vunpack.c.h.b16 %v1573
    %v1733 = vunpack.c.l.b16 %v1574
    %v1734 = vunpack.c.h.b16 %v1574
    %v1735 = vunpack.c.l.b16 %v1575
    %v1736 = vunpack.c.h.b16 %v1575
    %v1737 = vunpack.c.l.b16 %v1576
    %v1738 = vunpack.c.h.b16 %v1576
    %v1739 = vunpack.c.l.b16 %v1577
    %v1740 = vunpack.c.h.b16 %v1577
    %v1741 = vunpack.c.l.b16 %v1578
    %v1742 = vunpack.c.h.b16 %v1578
    %v1743 = vunpack.c.l.b16 %v1579
    %v1744 = vunpack.c.h.b16 %v1579
    %v1745 = vunpack.c.l.b16 %v1580
    %v1746 = vunpack.c.h.b16 %v1580
    %v1747 = vunpack.c.l.b16 %v1581
    %v1748 = vunpack.c.h.b16 %v1581
    %v1749 = vunpack.c.l.b16 %v1582
    %v1750 = vunpack.c.h.b16 %v1582
    %v1751 = vunpack.c.l.b16 %v1583
    %v1752 = vunpack.c.h.b16 %v1583
    %v1753 = vunpack.c.l.b16 %v1584
    %v1754 = vunpack.c.h.b16 %v1584
    %v1755 = vunpack.c.l.b16 %v1585
    %v1756 = vunpack.c.h.b16 %v1585
    %v1757 = vunpack.c.l.b16 %v1586
    %v1758 = vunpack.c.h.b16 %v1586
    %v1759 = vunpack.c.l.b16 %v1587
    %v1760 = vunpack.c.h.b16 %v1587
    %v1761 = vunpack.c.l.b16 %v1588
    %v1762 = vunpack.c.h.b16 %v1588
    %v1763 = vunpack.c.l.b16 %v1589
    %v1764 = vunpack.c.h.b16 %v1589
    %v1765 = vunpack.c.l.b16 %v1590
    %v1766 = vunpack.c.h.b16 %v1590
    %v1767 = vunpack.c.l.b16 %v1591
    %v1768 = vunpack.c.h.b16 %v1591
    %v1769 = vunpack.c.l.b16 %v1592
    %v1770 = vunpack.c.h.b16 %v1592
    %v1771 = vunpack.c.l.b16 %v1593
    %v1772 = vunpack.c.h.b16 %v1593
    %v1773 = vunpack.c.l.b16 %v1594
    %v1774 = vunpack.c.h.b16 %v1594
    %v1775 = vunpack.c.l.b16 %v1595
    %v1776 = vunpack.c.h.b16 %v1595
    %v1777 = vunpack.c.l.b16 %v1596
    %v1778 = vunpack.c.h.b16 %v1596
    %v1779 = vunpack.c.l.b16 %v1597
    %v1780 = vunpack.c.h.b16 %v1597
    %v1781 = vunpack.c.l.b16 %v1598
    %v1782 = vunpack.c.h.b16 %v1598
    %v1783 = vunpack.c.l.b16 %v1599
    %v1784 = vunpack.c.h.b16 %v1599
    %v1785 = vunpack.c.l.b16 %v1600
    %v1786 = vunpack.c.h.b16 %v1600
    %v1787 = vunpack.c.l.b16 %v1601
    %v1788 = vunpack.c.h.b16 %v1601
    %v1789 = vunpack.c.l.b16 %v1602
    %v1790 = vunpack.c.h.b16 %v1602
    %v1791 = vunpack.c.l.b16 %v1603
    %v1792 = vunpack.c.h.b16 %v1603
    %v1793 = vunpack.c.l.b16 %v1604
    %v1794 = vunpack.c.h.b16 %v1604
    %v1795 = vunpack.c.l.b16 %v1605
    %v1796 = vunpack.c.h.b16 %v1605
    %v1797 = vunpack.c.l.b16 %v1606
    %v1798 = vunpack.c.h.b16 %v1606
    %v1799 = vunpack.c.l.b16 %v1607
    %v1800 = vunpack.c.h.b16 %v1607
    %v1801 = vunpack.c.l.b16 %v1608
    %v1802 = vunpack.c.h.b16 %v1608
    %v1803 = vunpack.c.l.b16 %v1609
    %v1804 = vunpack.c.h.b16 %v1609
    %v1805 = vunpack.c.l.b16 %v1610
    %v1806 = vunpack.c.h.b16 %v1610
    %v1807 = vunpack.c.l.b16 %v1611
    %v1808 = vunpack.c.h.b16 %v1611
    %v1809 = vunpack.c.l.b16 %v1612
    %v1810 = vunpack.c.h.b16 %v1612
    %v1811 = vunpack.c.l.b16 %v1613
    %v1812 = vunpack.c.h.b16 %v1613
    %v1813 = vunpack.c.l.b16 %v1614
    %v1814 = vunpack.c.h.b16 %v1614
    %v1815 = vunpack.c.l.b16 %v1615
    %v1816 = vunpack.c.h.b16 %v1615
    %v1817 = vunpack.c.l.b16 %v1616
    %v1818 = vunpack.c.h.b16 %v1616
    %v1819 = vunpack.c.l.b16 %v1617
    %v1820 = vunpack.c.h.b16 %v1617
    %v1821 = vunpack.c.l.b16 %v1618
    %v1822 = vunpack.c.h.b16 %v1618
    %v1823 = vpack.c.b16 %v1697, %v1695
    %v1824 = vpack.c.b16 %v1698, %v1696
    %v1825 = vpack.c.b16 %v1701, %v1699
    %v1826 = vpack.c.b16 %v1702, %v1700
    %v1827 = vpack.c.b16 %v1705, %v1703
    %v1828 = vpack.c.b16 %v1706, %v1704
    %v1829 = vpack.c.b16 %v1709, %v1707
    %v1830 = vpack.c.b16 %v1710, %v1708
    %v1831 = vpack.c.b16 %v1713, %v1711
    %v1832 = vpack.c.b16 %v1714, %v1712
    %v1833 = vpack.c.b16 %v1717, %v1715
    %v1834 = vpack.c.b16 %v1718, %v1716
    %v1835 = vpack.c.b16 %v1721, %v1719
    %v1836 = vpack.c.b16 %v1722, %v1720
    %v1837 = vpack.c.b16 %v1725, %v1723
    %v1838 = vpack.c.b16 %v1726, %v1724
    %v1839 = vpack.c.b16 %v1729, %v1727
    %v1840 = vpack.c.b16 %v1730, %v1728
    %v1841 = vpack.c.b16 %v1733, %v1731
    %v1842 = vpack.c.b16 %v1734, %v1732
    %v1843 = vpack.c.b16 %v1737, %v1735
    %v1844 = vpack.c.b16 %v1738, %v1736
    %v1845 = vpack.c.b16 %v1741, %v1739
    %v1846 = vpack.c.b16 %v1742, %v1740
    %v1847 = vpack.c.b16 %v1745, %v1743
    %v1848 = vpack.c.b16 %v1746, %v1744
    %v1849 = vpack.c.b16 %v1749, %v1747
    %v1850 = vpack.c.b16 %v1750, %v1748
    %v1851 = vpack.c.b16 %v1753, %v1751
    %v1852 = vpack.c.b16 %v1754, %v1752
    %v1853 = vpack.c.b16 %v1757, %v1755
    %v1854 = vpack.c.b16 %v1758, %v1756
    %v1855 = vpack.c.b16 %v1761, %v1759
    %v1856 = vpack.c.b16 %v1762, %v1760
    %v1857 = vpack.c.b16 %v1765, %v1763
    %v1858 = vpack.c.b16 %v1766, %v1764
    %v1859 = vpack.c.b16 %v1769, %v1767
    %v1860 = vpack.c.b16 %v1770, %v1768
    %v1861 = vpack.c.b16 %v1773, %v1771
    %v1862 = vpack.c.b16 %v1774, %v1772
    %v1863 = vpack.c.b16 %v1777, %v1775
    %v1864 = vpack.c.b16 %v1778, %v1776
    %v1865 = vpack.c.b16 %v1781, %v1779
    %v1866 = vpack.c.b16 %v1782, %v1780
    %v1867 = vpack.c.b16 %v1785, %v1783
    %v1868 = vpack.c.b16 %v1786, %v1784
    %v1869 = vpack.c.b16 %v1789, %v1787
    %v1870 = vpack.c.b16 %v1790, %v1788
    %v1871 = vpack.c.b16 %v1793, %v1791
    %v1872 = vpack.c.b16 %v1794, %v1792
    %v1873 = vpack.c.b16 %v1797, %v1795
    %v1874 = vpack.c.b16 %v1798, %v1796
    %v1875 = vpack.c.b16 %v1801, %v1799
    %v1876 = vpack.c.b16 %v1802, %v1800
    %v1877 = vpack.c.b16 %v1805, %v1803
    %v1878 = vpack.c.b16 %v1806, %v1804
    %v1879 = vpack.c.b16 %v1809, %v1807
    %v1880 = vpack.c.b16 %v1810, %v1808
    %v1881 = vpack.c.b16 %v1813, %v1811
    %v1882 = vpack.c.b16 %v1814, %v1812
    %v1883 = vpack.c.b16 %v1817, %v1815
    %v1884 = vpack.c.b16 %v1818, %v1816
    %v1885 = vpack.c.b16 %v1821, %v1819
    %v1886 = vpack.c.b16 %v1822, %v1820
    %1951 = vmatprep.subr.bf16.mxu0 %v1824
    %1952 = vmatpush1.bf16.msra.mxu0 %v1823
    %1953 = vmatprep.subr.bf16.mxu0 %v1826
    %1954 = vmatpush1.bf16.msra.mxu0 %v1825
    %1955 = vmatprep.subr.bf16.mxu0 %v1828
    %1956 = vmatpush1.bf16.msra.mxu0 %v1827
    %1957 = vmatprep.subr.bf16.mxu0 %v1830
    %1958 = vmatpush1.bf16.msra.mxu0 %v1829
    %1959 = vmatprep.subr.bf16.mxu0 %v1832
    %1960 = vmatpush1.bf16.msra.mxu0 %v1831
    %1961 = vmatprep.subr.bf16.mxu0 %v1834
    %1962 = vmatpush1.bf16.msra.mxu0 %v1833
    %1963 = vmatprep.subr.bf16.mxu0 %v1836
    %1964 = vmatpush1.bf16.msra.mxu0 %v1835
    %1965 = vmatprep.subr.bf16.mxu0 %v1838
    %1966 = vmatpush1.bf16.msra.mxu0 %v1837
    %1967 = vmatprep.subr.bf16.mxu0 %v1840
    %1968 = vmatpush1.bf16.msra.mxu0 %v1839
    %1969 = vmatprep.subr.bf16.mxu0 %v1842
    %1970 = vmatpush1.bf16.msra.mxu0 %v1841
    %1971 = vmatprep.subr.bf16.mxu0 %v1844
    %1972 = vmatpush1.bf16.msra.mxu0 %v1843
    %1973 = vmatprep.subr.bf16.mxu0 %v1846
    %1974 = vmatpush1.bf16.msra.mxu0 %v1845
    %1975 = vmatprep.subr.bf16.mxu0 %v1848
    %1976 = vmatpush1.bf16.msra.mxu0 %v1847
    %1977 = vmatprep.subr.bf16.mxu0 %v1850
    %1978 = vmatpush1.bf16.msra.mxu0 %v1849
    %1979 = vmatprep.subr.bf16.mxu0 %v1852
    %1980 = vmatpush1.bf16.msra.mxu0 %v1851
    %1981 = vmatprep.subr.bf16.mxu0 %v1854
    %1982 = vmatpush1.bf16.msra.mxu0 %v1853
    %1983 = vmatprep.mubr.bf16.mxu0 %v1549
    %1984 = vmatmul.mubr.bf16.gmra.mrb[0].mxu0 %v1548
    %v1985 = vpop.f32.mrb[0].mxu0
    %v1986 = vadd.f32 %v1624, %v1985
    %v1987 = vpop.f32.mrb[0].mxu0
    %v1988 = vadd.f32 %v1628, %v1987
    %v1989 = vpop.f32.mrb[0].mxu0
    %v1990 = vpop.f32.mrb[0].mxu0
    %1991 = vdwg.mxu0
    %1992 = vmatprep.subr.bf16.mxu0 %v1856
    %1993 = vmatpush1.bf16.msra.mxu0 %v1855
    %1994 = vmatprep.subr.bf16.mxu0 %v1858
    %1995 = vmatpush1.bf16.msra.mxu0 %v1857
    %1996 = vmatprep.subr.bf16.mxu0 %v1860
    %1997 = vmatpush1.bf16.msra.mxu0 %v1859
    %1998 = vmatprep.subr.bf16.mxu0 %v1862
    %1999 = vmatpush1.bf16.msra.mxu0 %v1861
    %2000 = vmatprep.subr.bf16.mxu0 %v1864
    %2001 = vmatpush1.bf16.msra.mxu0 %v1863
    %2002 = vmatprep.subr.bf16.mxu0 %v1866
    %2003 = vmatpush1.bf16.msra.mxu0 %v1865
    %2004 = vmatprep.subr.bf16.mxu0 %v1868
    %2005 = vmatpush1.bf16.msra.mxu0 %v1867
    %2006 = vmatprep.subr.bf16.mxu0 %v1870
    %2007 = vmatpush1.bf16.msra.mxu0 %v1869
    %2008 = vmatprep.subr.bf16.mxu0 %v1872
    %2009 = vmatpush1.bf16.msra.mxu0 %v1871
    %2010 = vmatprep.subr.bf16.mxu0 %v1874
    %2011 = vmatpush1.bf16.msra.mxu0 %v1873
    %2012 = vmatprep.subr.bf16.mxu0 %v1876
    %2013 = vmatpush1.bf16.msra.mxu0 %v1875
    %2014 = vmatprep.subr.bf16.mxu0 %v1878
    %2015 = vmatpush1.bf16.msra.mxu0 %v1877
    %2016 = vmatprep.subr.bf16.mxu0 %v1880
    %2017 = vmatpush1.bf16.msra.mxu0 %v1879
    %2018 = vmatprep.subr.bf16.mxu0 %v1882
    %2019 = vmatpush1.bf16.msra.mxu0 %v1881
    %2020 = vmatprep.subr.bf16.mxu0 %v1884
    %2021 = vmatpush1.bf16.msra.mxu0 %v1883
    %2022 = vmatprep.subr.bf16.mxu0 %v1886
    %2023 = vmatpush1.bf16.msra.mxu0 %v1885
    %2024 = vmatprep.mubr.bf16.mxu0 %v1551
    %2025 = vmatmul.mubr.bf16.gmra.mrb[0].mxu0 %v1550
    %v2026 = vpop.f32.mrb[0].mxu0
    %v2027 = vadd.f32 %v1986, %v2026
    %v2028 = vpop.f32.mrb[0].mxu0
    %v2029 = vadd.f32 %v1988, %v2028
    %v2030 = vpop.f32.mrb[0].mxu0
    %v2031 = vpop.f32.mrb[0].mxu0
    %2032 = vdwg.mxu0
    %v2033 = vsub.f32 0.0, %v2027
    %v2034 = vsub.f32 0.0, %v2029
    %v2035 = vmul.f32 %v2033, 1.442695
    %v2036 = vpow.pop %v2035
    %v2037 = vmul.f32 %v2034, 1.442695
    %v2038 = vpow.pop %v2037
    %v2039 = vadd.f32 %v2036, 1.0
    %v2040 = vadd.f32 %v2038, 1.0
    %v2041 = vrcp.pop %v2039
    %v2042 = vrcp.pop %v2040
    %v2043 = vpack.c.bf16 %v2041, %v2041
    %v2044 = vpack.c.bf16 %v2042, %v2042
    %v2047 = vunpack.c.l.b16 %v2043
    %v2048 = vunpack.c.l.b16 %v2044
    %v2049 = vpack.c.b16 %v2048, %v2047
    %2051 = vst [vmem:[#allocation17] sm:$0xff] %v2049
    %v2052 = vld [vmem:[#allocation14] sm:$0xf]
    %v2053 = vld [vmem:[#allocation14 + $0x4] sm:$0xf]
    %v2054 = vld [vmem:[#allocation14 + $0x8] sm:$0xf]
    %v2055 = vld [vmem:[#allocation14 + $0xc] sm:$0xf]
    %v2056 = vld [vmem:[#allocation14 + $0x10] sm:$0xf]
    %v2057 = vld [vmem:[#allocation14 + $0x14] sm:$0xf]
    %v2058 = vld [vmem:[#allocation14 + $0x18] sm:$0xf]
    %v2059 = vld [vmem:[#allocation14 + $0x1c] sm:$0xf]
    %v2060 = vld [vmem:[#allocation14 + $0x20] sm:$0xf]
    %v2061 = vld [vmem:[#allocation14 + $0x24] sm:$0xf]
    %v2062 = vld [vmem:[#allocation14 + $0x28] sm:$0xf]
    %v2063 = vld [vmem:[#allocation14 + $0x2c] sm:$0xf]
    %v2064 = vld [vmem:[#allocation14 + $0x30] sm:$0xf]
    %v2065 = vld [vmem:[#allocation14 + $0x34] sm:$0xf]
    %v2066 = vld [vmem:[#allocation14 + $0x38] sm:$0xf]
    %v2067 = vld [vmem:[#allocation14 + $0x3c] sm:$0xf]
    %v2068 = vld [vmem:[%s12] sm:$0x1]
    %v2070 = vlaneseq
    %v2071 = vshrl.u32 %v2070, 7
    %v2072 = vsub.s32 0, %v2071
    %v2073 = vrot.slane %v2068, %v2072
    %v2091 = vunpack.c.l.b16 %v2052
    %v2092 = vunpack.c.l.b16 %v2053
    %v2093 = vunpack.c.l.b16 %v2054
    %v2094 = vunpack.c.l.b16 %v2055
    %v2095 = vunpack.c.l.b16 %v2056
    %v2096 = vunpack.c.l.b16 %v2057
    %v2097 = vunpack.c.l.b16 %v2058
    %v2098 = vunpack.c.l.b16 %v2059
    %v2099 = vunpack.c.l.b16 %v2060
    %v2100 = vunpack.c.l.b16 %v2061
    %v2101 = vunpack.c.l.b16 %v2062
    %v2102 = vunpack.c.l.b16 %v2063
    %v2103 = vunpack.c.l.b16 %v2064
    %v2104 = vunpack.c.l.b16 %v2065
    %v2105 = vunpack.c.l.b16 %v2066
    %v2106 = vunpack.c.l.b16 %v2067
    %v2107 = vpack.c.b16 %v2092, %v2091
    %v2108 = vpack.c.b16 %v2094, %v2093
    %v2109 = vpack.c.b16 %v2096, %v2095
    %v2110 = vpack.c.b16 %v2098, %v2097
    %v2111 = vpack.c.b16 %v2100, %v2099
    %v2112 = vpack.c.b16 %v2102, %v2101
    %v2113 = vpack.c.b16 %v2104, %v2103
    %v2114 = vpack.c.b16 %v2106, %v2105
    %2123 = vmatprep.subr.bf16.mxu0 0
    %2124 = vmatpush1.bf16.msra.mxu0 %v2107
    %2125 = vmatprep.subr.bf16.mxu0 0
    %2126 = vmatpush1.bf16.msra.mxu0 %v2108
    %2127 = vmatprep.subr.bf16.mxu0 0
    %2128 = vmatpush1.bf16.msra.mxu0 %v2109
    %2129 = vmatprep.subr.bf16.mxu0 0
    %2130 = vmatpush1.bf16.msra.mxu0 %v2110
    %2131 = vmatprep.subr.bf16.mxu0 0
    %2132 = vmatpush1.bf16.msra.mxu0 %v2111
    %2133 = vmatprep.subr.bf16.mxu0 0
    %2134 = vmatpush1.bf16.msra.mxu0 %v2112
    %2135 = vmatprep.subr.bf16.mxu0 0
    %2136 = vmatpush1.bf16.msra.mxu0 %v2113
    %2137 = vmatprep.subr.bf16.mxu0 0
    %2138 = vmatpush1.bf16.msra.mxu0 %v2114
    %2139 = vmatprep.subr.bf16.mxu0 0
    %2140 = vmatpush1.bf16.msra.mxu0 0
    %2141 = vmatprep.subr.bf16.mxu0 0
    %2142 = vmatpush1.bf16.msra.mxu0 0
    %2143 = vmatprep.subr.bf16.mxu0 0
    %2144 = vmatpush1.bf16.msra.mxu0 0
    %2145 = vmatprep.subr.bf16.mxu0 0
    %2146 = vmatpush1.bf16.msra.mxu0 0
    %2147 = vmatprep.subr.bf16.mxu0 0
    %2148 = vmatpush1.bf16.msra.mxu0 0
    %2149 = vmatprep.subr.bf16.mxu0 0
    %2150 = vmatpush1.bf16.msra.mxu0 0
    %2151 = vmatprep.subr.bf16.mxu0 0
    %2152 = vmatpush1.bf16.msra.mxu0 0
    %2153 = vmatprep.subr.bf16.mxu0 0
    %2154 = vmatpush1.bf16.msra.mxu0 0
    %2155 = vmatprep.mubr.bf16.mxu0 0
    %2156 = vmatmul.mubr.bf16.gmra.mrb[0].mxu0 %v1554
    %v2157 = vpop.f32.mrb[0].mxu0
    %v2158 = vadd.f32 %v2073, %v2157
    %v2159 = vpop.f32.mrb[0].mxu0
    %v2160 = vpop.f32.mrb[0].mxu0
    %v2161 = vpop.f32.mrb[0].mxu0
    %2162 = vdwg.mxu0
    %2163 = vmax.xlane.f32.xlu0 %v2158
    %v2164 = vpop.xlane.xlu0 %2163
    %v2165 = vsub.f32 %v2158, %v2164
    %v2166 = vmul.f32 %v2165, 1.442695
    %v2167 = vpow.pop %v2166
    %2168 = vadd.xlane.f32.xlu0 %v2167
    %v2169 = vpop.xlane.xlu0 %2168
    %v2170 = vrcp.pop %v2169
    %v2171 = vmul.f32 %v2167, %v2170
    %v2172 = vpack.c.bf16 %v2171, %v2171
    %2173 = vst [vmem:[#allocation19] sm:$0xf] %v2172
    // Predicated region
    $region86: #{tpu_custom_call.1} parent=1 // pred_check
      _
    $region87: #{tpu_custom_call.1} parent=1 // pred_check_branch
      %2175 = sbr.rel (0) target = $region89
    $region88: #{tpu_custom_call.1} parent=1 // pred_region
      %s2177 = ssub.s32 128, 128
      %2178 = vsyncadd [#allocation4], %s2177
      %s2180 = sshll.u32 [#allocation16], 4
      %s2181 = int_to_ptr.vmem [resolvable:$true] %s2180
      %2183 = dma.vmem_to_hbm [thread:$0]  %s2181, 128, %s13, [#allocation4]
    $region89: #{tpu_custom_call.1} parent=1 // pred_fallthru
      _
    // Predicated region
    $region90: #{tpu_custom_call.1} parent=1 // pred_check
      _
    $region91: #{tpu_custom_call.1} parent=1 // pred_check_branch
      %2185 = sbr.rel (0) target = $region93
    $region92: #{tpu_custom_call.1} parent=1 // pred_region
      %s2187 = ssub.s32 128, 128
      %2188 = vsyncadd [#allocation18], %s2187
      %s2190 = sshll.u32 [#allocation17], 4
      %s2191 = int_to_ptr.vmem [resolvable:$true] %s2190
      %2193 = dma.vmem_to_hbm [thread:$0]  %s2191, 128, %s14, [#allocation18]
    $region93: #{tpu_custom_call.1} parent=1 // pred_fallthru
      _
    // Predicated region
    $region94: #{tpu_custom_call.1} parent=1 // pred_check
      _
    $region95: #{tpu_custom_call.1} parent=1 // pred_check_branch
      %2195 = sbr.rel (0) target = $region97
    $region96: #{tpu_custom_call.1} parent=1 // pred_region
      %s2197 = ssub.s32 64, 64
      %2198 = vsyncadd [#allocation18], %s2197
      %s2200 = sshll.u32 [#allocation19], 4
      %s2201 = int_to_ptr.vmem [resolvable:$true] %s2200
      %2203 = dma.vmem_to_hbm [thread:$0]  %s2201, 64, %s15, [#allocation18]
    $region97: #{tpu_custom_call.1} parent=1 // pred_fallthru
      _
    // Predicated region
    $region98: #{tpu_custom_call.1} parent=1 // pred_check
      _
    $region99: #{tpu_custom_call.1} parent=1 // pred_check_branch
      %2205 = sbr.rel (0) target = $region101
    $region100: #{tpu_custom_call.1} parent=1 // pred_region
      %2206 = dma.done [#allocation4], 128
    $region101: #{tpu_custom_call.1} parent=1 // pred_fallthru
      _
    // Predicated region
    $region102: #{tpu_custom_call.1} parent=1 // pred_check
      _
    $region103: #{tpu_custom_call.1} parent=1 // pred_check_branch
      %2208 = sbr.rel (0) target = $region105
    $region104: #{tpu_custom_call.1} parent=1 // pred_region
      %2209 = dma.done [#allocation18], 128
    $region105: #{tpu_custom_call.1} parent=1 // pred_fallthru
      _
    // Predicated region
    $region106: #{tpu_custom_call.1} parent=1 // pred_check
      _
    $region107: #{tpu_custom_call.1} parent=1 // pred_check_branch
      %2211 = sbr.rel (0) target = $region109
    $region108: #{tpu_custom_call.1} parent=1 // pred_region
      %2212 = dma.done [#allocation18], 64
    $region109: #{tpu_custom_call.1} parent=1 // pred_fallthru
      _
    %2213 = vsyncpa [#allocation3], 1
    %2214 = vsyncpa [#allocation6], 1
    %2215 = vsyncpa [#allocation9], 1
    %2216 = vsyncpa [#allocation12], 1
    %2217 = vsyncpa [#allocation15], 1
    %2218 = vsyncpa [#allocation4], 1
    %2219 = vsyncpa [#allocation18], 1

</llo_original>
